<compile_context>
chip_gen: v6e
topology: v6e:2x2x1
jax: 0.10.0
libtpu: 0.0.40
codegen_flags: <defaults>
</compile_context>

<pallas_src>
import functools

import jax
import jax.numpy as jnp
import numpy as np
from jax.experimental import pallas as pl
from jax.experimental.pallas import tpu as pltpu

C_IN = 16            # conv in/out channels (fixed by the module)
K = 3                # conv kernel size
HIDDEN = 32          # hidden_layer_size (module default 50; small here)
OUT_FEATURES = 302   # linear out_features (fixed by the module)
HEAD_PAD = ((2 * OUT_FEATURES + 127) // 128) * 128   # 640: lane-dense fused head
BN_EPS = 1e-5


def _round_up(x, m):
    return (x + m - 1) // m * m


def _sigmoid(x):
    return 1.0 / (1.0 + jnp.exp(-x))


def _lstm_momentum_kernel(
    slab_ref,      # (1, 2*(T+1)*BB, C) bf16: [even | odd] x_pad parities, time-major rows
    w_conv_ref,    # (3C, C)  bf16, BN-folded, rows = [w0; w1; w2]
    b_conv_ref,    # (1, C)   f32, BN-folded
    w_ih_f_ref,    # (C, 4H)  bf16 (g columns pre-scaled by 2)
    b_f_ref,       # (1, 4H)  f32  (g columns pre-scaled by 2)
    w_hh_f_ref,    # (H, 4H)  f32  (g columns pre-scaled by 2)
    w_ih_b_ref,    # (C, 4H)  bf16 (g columns pre-scaled by 2)
    b_b_ref,       # (1, 4H)  f32  (g columns pre-scaled by 2)
    w_head_ref,    # (2H, HEAD_PAD) bf16, fused [p1 | p2] head
    b_head_ref,    # (1, HEAD_PAD)  f32
    out_ref,       # (1, BB, HEAD_PAD) f32
    pooled_ref,    # VMEM (T*BB, C)  bf16 scratch
    xg_ref,        # VMEM (T*BB, 4H) f32  scratch
    *, T, BB, H, C,
):
    TBB = T * BB
    P = (T + 1) * BB          # row offset of the odd-parity half of the slab

    def sigmoid(v):           # one EUP op (tanh) instead of exp + divide
        return 0.5 * jnp.tanh(0.5 * v) + 0.5

    def dot(a, b):
        return jnp.dot(a, b, preferred_element_type=jnp.float32)

    # --- Conv1d(k=3, pad=1) + folded BatchNorm + ReLU + MaxPool1d(2, 2).
    # Taps are sublane-aligned row slices of the single slab (no HBM duplication):
    #   even output 2t   needs x_pad[2t],   x_pad[2t+1], x_pad[2t+2] = E[t], O[t], E[t+1]
    #   odd  output 2t+1 needs x_pad[2t+1], x_pad[2t+2], x_pad[2t+3] = O[t], E[t+1], O[t+1]
    w0 = w_conv_ref[0:C, :]
    w1 = w_conv_ref[C:2 * C, :]
    w2 = w_conv_ref[2 * C:3 * C, :]
    b_conv = b_conv_ref[...]

    e0 = slab_ref[0, 0:TBB, :]                    # E[0..T-1]
    e1 = slab_ref[0, BB:BB + TBB, :]              # E[1..T]
    o0 = slab_ref[0, P:P + TBB, :]                # O[0..T-1]
    o1 = slab_ref[0, P + BB:P + BB + TBB, :]      # O[1..T]

    ye = dot(e0, w0) + dot(o0, w1) + dot(e1, w2) + b_conv
    yo = dot(o0, w0) + dot(e1, w1) + dot(o1, w2) + b_conv
    pooled_ref[...] = jnp.maximum(jnp.maximum(ye, yo), 0.0).astype(pooled_ref.dtype)

    # --- Forward LSTM.  Input-gate pre-activations go to a VMEM scratch ref (not
    # the 64-vreg register file) and are streamed BB rows per step.
    xg_ref[...] = dot(pooled_ref[...], w_ih_f_ref[...]) + b_f_ref[...]   # (T*BB, 4H)

    w_hh = w_hh_f_ref[...]                        # loop-invariant (H, 4H) f32
    # TODO(synk): verify in the bundle dump that w_hh is pushed to the MXU once per
    # kernel (not per unrolled step); otherwise drive the recurrence with
    # pltpu.matmul_push_rhs / matmul_acc_lhs / matmul_pop.
    h0 = jnp.zeros((BB, H), jnp.float32)
    c0 = jnp.zeros((BB, H), jnp.float32)

    def step(row0, h, c):
        gates = xg_ref[pl.ds(row0, BB), :] + dot(h, w_hh)       # (BB, 4H) f32
        sg = sigmoid(gates)                                     # single EUP block
        g = 2.0 * sg[:, 2 * H:3 * H] - 1.0                      # tanh(g); g cols pre-scaled
        c = sg[:, H:2 * H] * c + sg[:, 0:H] * g
        h = sg[:, 3 * H:4 * H] * jnp.tanh(c)
        return h, c

    if T <= 16:                                   # short sequences: static unroll
        h, c = h0, c0
        for t in range(T):
            h, c = step(t * BB, h, c)
    else:                                         # long sequences: bounded live ranges
        def body(t, carry):
            return step(pl.multiple_of(t * BB, BB), carry[0], carry[1])
        h, c = jax.lax.fori_loop(0, T, body, (h0, c0), unroll=4)

    # --- Backward LSTM direction: only lstm_out[:, -1, :] is consumed downstream,
    # which for the reverse direction is its FIRST processed step with zero initial
    # state, so c_prev = 0 and the h-to-h term vanishes.
    # NOTE: if the head ever reads other timesteps, this shortcut breaks.
    x_last = pooled_ref[pl.ds((T - 1) * BB, BB), :]             # (BB, C) bf16
    gb = dot(x_last, w_ih_b_ref[...]) + b_b_ref[...]
    sb = sigmoid(gb)
    g_b = 2.0 * sb[:, 2 * H:3 * H] - 1.0
    h_bwd = sb[:, 3 * H:4 * H] * jnp.tanh(sb[:, 0:H] * g_b)

    # --- Dropout = identity (inference).  Fused p1/p2 heads: one K=2H matmul on
    # concat(h_fwd, h_bwd); single lane-dense (BB, HEAD_PAD) store.
    # TODO(synk): training-mode dropout / batch-stat BatchNorm not implemented.
    hcat = jnp.concatenate([h, h_bwd], axis=-1).astype(w_head_ref.dtype)   # (BB, 2H)
    logits = dot(hcat, w_head_ref[...]) + b_head_ref[...]
    out_ref[0] = sigmoid(logits)


def pack_params(p):
    """Fold inference BN into the conv, pre-scale g-gate columns, fuse heads, cast bf16."""
    H, C = HIDDEN, C_IN
    scale = p["gamma"] * jax.lax.rsqrt(p["var"] + BN_EPS)                  # (1, C)
    w_conv = jnp.concatenate([p["w0"], p["w1"], p["w2"]], axis=0) * scale  # (3C, C)
    b_conv = (p["b_conv"] - p["mean"]) * scale + p["beta"]                 # (1, C)

    # Gate rescale: multiply the g-gate (cell candidate) columns by 2 so a single
    # full-block sigmoid recovers tanh(g) = 2*sigmoid(2g) - 1 in the kernel.
    gate_scale = jnp.ones((1, 4 * H), jnp.float32).at[:, 2 * H:3 * H].set(2.0)
    w_ih_f = p["w_ih_f"] * gate_scale
    w_hh_f = p["w_hh_f"] * gate_scale
    b_f = p["b_f"] * gate_scale
    w_ih_b = p["w_ih_b"] * gate_scale
    b_b = p["b_b"] * gate_scale

    pad = HEAD_PAD - 2 * OUT_FEATURES
    w_head = jnp.pad(jnp.concatenate([p["w_p1"], p["w_p2"]], axis=1),
                     ((0, 0), (0, pad)))                                   # (2H, 640)
    b_head = jnp.pad(jnp.concatenate([p["b_p1"], p["b_p2"]], axis=1),
                     ((0, 0), (0, pad)))

    bf16 = jnp.bfloat16
    return dict(
        w_conv=w_conv.astype(bf16), b_conv=b_conv,
        w_ih_f=w_ih_f.astype(bf16), b_f=b_f,
        w_hh_f=w_hh_f,                      # stays f32: serial recurrence precision
        w_ih_b=w_ih_b.astype(bf16), b_b=b_b,
        w_head=w_head.astype(bf16), b_head=b_head)


def lstm_momentum_forward(x, params, *, block_b=None):
    """x: (B, 16, L) float32 in PyTorch NCW layout. Returns (p1, p2): (B, 302)."""
    B, C, L = x.shape
    assert C == C_IN and L % 2 == 0   # MaxPool1d(2,2) drops a trailing odd element in torch
    T = L // 2
    H = HIDDEN

    # Batch block: multiple of 8 (vreg sublanes), up to 256 rows (fills the MXU M
    # dim on v6e/v7x; per-block VMEM is < 2 MiB).  For B > 16 force >= 2 blocks so
    # the "parallel" grid axis shards across both v7x TensorCores.
    if block_b is None:
        block_b = B if B <= 16 else min(-(-B // 2), 256)
    BB = _round_up(max(block_b, 1), 8)
    Bp = _round_up(B, BB)
    nb = Bp // BB

    pk = pack_params(params)

    # layout: NCW -> channels-last, pad length by 1 (conv padding=1), de-interleave
    # even/odd positions so the MaxPool parities become aligned row blocks; the k=3
    # taps are formed IN-KERNEL as row slices (no 3x duplication in HBM).
    x_cl = jnp.transpose(x, (0, 2, 1)).astype(jnp.float32)       # (B, L, C)
    x_pad = jnp.pad(x_cl, ((0, 0), (1, 1), (0, 0)))              # (B, L+2, C)
    xe = x_pad[:, 0::2, :]                                       # (B, T+1, C)
    xo = x_pad[:, 1::2, :]                                       # (B, T+1, C)

    def to_blocks(a):   # (B, T+1, C) -> (nb, (T+1)*BB, C), time-major: row = t*BB + i
        a = jnp.pad(a, ((0, Bp - B), (0, 0), (0, 0)))
        return (a.reshape(nb, BB, T + 1, C)
                 .transpose(0, 2, 1, 3)
                 .reshape(nb, (T + 1) * BB, C))

    slab = jnp.concatenate([to_blocks(xe), to_blocks(xo)], axis=1)   # (nb, 2(T+1)BB, C)
    slab = slab.astype(jnp.bfloat16)
    # TODO(synk): allow_input_fusion / in-kernel NCW de-interleave would avoid
    # materializing `slab` in HBM entirely (one extra ~|x|-sized round trip today).

    weights = (pk["w_conv"], pk["b_conv"], pk["w_ih_f"], pk["b_f"], pk["w_hh_f"],
               pk["w_ih_b"], pk["b_b"], pk["w_head"], pk["b_head"])

    def shared(arr):
        nd = arr.ndim
        return pl.BlockSpec(arr.shape, lambda b, _n=nd: (0,) * _n)

    out = pl.pallas_call(
        functools.partial(_lstm_momentum_kernel, T=T, BB=BB, H=H, C=C),
        out_shape=jax.ShapeDtypeStruct((nb, BB, HEAD_PAD), jnp.float32),
        grid=(nb,),
        in_specs=[pl.BlockSpec((1, 2 * (T + 1) * BB, C), lambda b: (b, 0, 0))]
                 + [shared(w) for w in weights],
        out_specs=pl.BlockSpec((1, BB, HEAD_PAD), lambda b: (b, 0, 0)),
        scratch_shapes=[pltpu.VMEM((T * BB, C), jnp.bfloat16),       # pooled conv output
                        pltpu.VMEM((T * BB, 4 * H), jnp.float32)],   # input-gate preacts
        compiler_params=pltpu.CompilerParams(dimension_semantics=("parallel",)),
    )(slab, *weights)

    out = out.reshape(nb * BB, HEAD_PAD)[:B]
    return out[:, :OUT_FEATURES], out[:, OUT_FEATURES:2 * OUT_FEATURES]


def init_params(key):
    """Deterministic parameter init mirroring the PyTorch module's shapes."""
    H, C = HIDDEN, C_IN
    ks = jax.random.split(key, 18)

    def u(k, shape, bound):
        return jax.random.uniform(k, shape, jnp.float32, -bound, bound)

    conv_bound = 1.0 / np.sqrt(C * K)
    conv_w = u(ks[0], (C, C, K), conv_bound)       # torch layout (Cout, Cin, K)
    conv_b = u(ks[1], (C,), conv_bound)

    lstm_bound = 1.0 / np.sqrt(H)
    w_ih_f = u(ks[2], (4 * H, C), lstm_bound)      # torch layout (4H, Cin), gates i,f,g,o
    w_hh_f = u(ks[3], (4 * H, H), lstm_bound)
    b_ih_f = u(ks[4], (4 * H,), lstm_bound)
    b_hh_f = u(ks[5], (4 * H,), lstm_bound)
    w_ih_b = u(ks[6], (4 * H, C), lstm_bound)
    b_ih_b = u(ks[7], (4 * H,), lstm_bound)
    b_hh_b = u(ks[8], (4 * H,), lstm_bound)

    lin_bound = 1.0 / np.sqrt(2 * H)
    w_p1 = u(ks[9], (OUT_FEATURES, 2 * H), lin_bound)
    b_p1 = u(ks[10], (OUT_FEATURES,), lin_bound)
    w_p2 = u(ks[11], (OUT_FEATURES, 2 * H), lin_bound)
    b_p2 = u(ks[12], (OUT_FEATURES,), lin_bound)

    # Non-trivial BatchNorm running stats so the BN fold is actually exercised.
    gamma = jax.random.uniform(ks[13], (1, C), jnp.float32, 0.8, 1.2)
    beta = jax.random.uniform(ks[14], (1, C), jnp.float32, -0.2, 0.2)
    mean = 0.1 * jax.random.normal(ks[15], (1, C), jnp.float32)
    var = jax.random.uniform(ks[16], (1, C), jnp.float32, 0.5, 1.5)

    return dict(
        w0=conv_w[:, :, 0].T, w1=conv_w[:, :, 1].T, w2=conv_w[:, :, 2].T,
        b_conv=conv_b[None, :],
        gamma=gamma, beta=beta, mean=mean, var=var,
        w_ih_f=w_ih_f.T, w_hh_f=w_hh_f.T, b_f=(b_ih_f + b_hh_f)[None, :],
        w_ih_b=w_ih_b.T, b_b=(b_ih_b + b_hh_b)[None, :],
        w_p1=w_p1.T, b_p1=b_p1[None, :],
        w_p2=w_p2.T, b_p2=b_p2[None, :],
    )


def reference_forward(x, params):
    """Pure-JAX f32 reference of the (inference-mode) PyTorch forward pass."""
    B, C, L = x.shape
    H = HIDDEN
    xc = jnp.transpose(x, (0, 2, 1)).astype(jnp.float32)
    xp = jnp.pad(xc, ((0, 0), (1, 1), (0, 0)))
    y = (xp[:, 0:L] @ params["w0"] + xp[:, 1:L + 1] @ params["w1"]
         + xp[:, 2:L + 2] @ params["w2"] + params["b_conv"])
    y = ((y - params["mean"]) * jax.lax.rsqrt(params["var"] + BN_EPS)
         * params["gamma"] + params["beta"])
    y = jnp.maximum(y, 0.0)
    pooled = jnp.maximum(y[:, 0::2, :], y[:, 1::2, :])   # (B, T, C)

    def step(carry, xt):
        h, c = carry
        gates = xt @ params["w_ih_f"] + h @ params["w_hh_f"] + params["b_f"]
        i = _sigmoid(gates[:, 0:H])
        f = _sigmoid(gates[:, H:2 * H])
        g = jnp.tanh(gates[:, 2 * H:3 * H])
        o = _sigmoid(gates[:, 3 * H:4 * H])
        c = f * c + i * g
        h = o * jnp.tanh(c)
        return (h, c), None

    h0 = jnp.zeros((B, H), jnp.float32)
    (h_fwd, _), _ = jax.lax.scan(step, (h0, h0), jnp.transpose(pooled, (1, 0, 2)))

    x_last = pooled[:, -1, :]
    gb = x_last @ params["w_ih_b"] + params["b_b"]
    i_b = _sigmoid(gb[:, 0:H])
    g_b = jnp.tanh(gb[:, 2 * H:3 * H])
    o_b = _sigmoid(gb[:, 3 * H:4 * H])
    h_bwd = o_b * jnp.tanh(i_b * g_b)

    hcat = jnp.concatenate([h_fwd, h_bwd], axis=1)
    p1 = _sigmoid(hcat @ params["w_p1"] + params["b_p1"])
    p2 = _sigmoid(hcat @ params["w_p2"] + params["b_p2"])
    return p1, p2


if __name__ == "__main__":
    key = jax.random.PRNGKey(0)
    pkey, xkey1, xkey2 = jax.random.split(key, 3)
    params = init_params(pkey)

    fwd = jax.jit(lstm_momentum_forward)

    # Tolerance is 1e-2 (was 1e-3) because the input slab / matmul weights are
    # bfloat16 per the perf review; the f32 reference is otherwise exact.
    TOL = dict(rtol=1e-2, atol=1e-2)

    # Case 1: tiny batch, single grid block, static-unroll recurrence (T = 8).
    B, L = 2, 16
    x = jax.random.normal(xkey1, (B, C_IN, L), jnp.float32)   # NCW, like the PyTorch module
    p1, p2 = jax.block_until_ready(fwd(x, params))
    assert p1.shape == (B, OUT_FEATURES) and p2.shape == (B, OUT_FEATURES)
    r1, r2 = reference_forward(x, params)
    np.testing.assert_allclose(np.asarray(p1), np.asarray(r1), **TOL)
    np.testing.assert_allclose(np.asarray(p2), np.asarray(r2), **TOL)

    # Case 2: multi-block grid (nb = 2, padded batch) + fori_loop recurrence (T = 20).
    B2, L2 = 24, 40
    x2 = jax.random.normal(xkey2, (B2, C_IN, L2), jnp.float32)
    q1, q2 = jax.block_until_ready(fwd(x2, params))
    s1, s2 = reference_forward(x2, params)
    np.testing.assert_allclose(np.asarray(q1), np.asarray(s1), **TOL)
    np.testing.assert_allclose(np.asarray(q2), np.asarray(s2), **TOL)

    print("KERNEL_OK")
</pallas_src>

<mosaic_0001>
module attributes {stable_mosaic.version = 11 : i64} {
  func.func @_lstm_momentum_kernel(%arg0: i32, %arg1: memref<1x144x16xbf16, #tpu.memory_space<vmem>>, %arg2: memref<48x16xbf16, #tpu.memory_space<vmem>>, %arg3: memref<1x16xf32, #tpu.memory_space<vmem>>, %arg4: memref<16x128xbf16, #tpu.memory_space<vmem>>, %arg5: memref<1x128xf32, #tpu.memory_space<vmem>>, %arg6: memref<32x128xf32, #tpu.memory_space<vmem>>, %arg7: memref<16x128xbf16, #tpu.memory_space<vmem>>, %arg8: memref<1x128xf32, #tpu.memory_space<vmem>>, %arg9: memref<64x640xbf16, #tpu.memory_space<vmem>>, %arg10: memref<1x640xf32, #tpu.memory_space<vmem>>, %arg11: memref<1x8x640xf32, #tpu.memory_space<vmem>>, %arg12: memref<64x16xbf16, #tpu.memory_space<vmem>>, %arg13: memref<64x128xf32, #tpu.memory_space<vmem>>) attributes {dimension_semantics = [#tpu.dimension_semantics<parallel>], iteration_bounds = array<i64: 1>, scalar_prefetch = 0 : i64, scratch_operands = 2 : i64, tpu.core_type = #tpu.core_type<tc>, window_params = [{transform_indices = @transform_0, window_bounds = array<i64: 1, 144, 16>}, {pipeline_mode = #tpu.pipeline_mode<synchronous>, transform_indices = @transform_1, window_bounds = array<i64: 48, 16>}, {pipeline_mode = #tpu.pipeline_mode<synchronous>, transform_indices = @transform_2, window_bounds = array<i64: 1, 16>}, {pipeline_mode = #tpu.pipeline_mode<synchronous>, transform_indices = @transform_3, window_bounds = array<i64: 16, 128>}, {pipeline_mode = #tpu.pipeline_mode<synchronous>, transform_indices = @transform_4, window_bounds = array<i64: 1, 128>}, {pipeline_mode = #tpu.pipeline_mode<synchronous>, transform_indices = @transform_5, window_bounds = array<i64: 32, 128>}, {pipeline_mode = #tpu.pipeline_mode<synchronous>, transform_indices = @transform_6, window_bounds = array<i64: 16, 128>}, {pipeline_mode = #tpu.pipeline_mode<synchronous>, transform_indices = @transform_7, window_bounds = array<i64: 1, 128>}, {pipeline_mode = #tpu.pipeline_mode<synchronous>, transform_indices = @transform_8, window_bounds = array<i64: 64, 640>}, {pipeline_mode = #tpu.pipeline_mode<synchronous>, transform_indices = @transform_9, window_bounds = array<i64: 1, 640>}, {transform_indices = @transform_10, window_bounds = array<i64: 1, 8, 640>}]} {
    %c0 = arith.constant 0 : index
    %c0_0 = arith.constant 0 : index
    %0 = vector.load %arg2[%c0, %c0_0] : memref<48x16xbf16, #tpu.memory_space<vmem>>, vector<16x16xbf16>
    %c16 = arith.constant 16 : index
    %c0_1 = arith.constant 0 : index
    %1 = vector.load %arg2[%c16, %c0_1] : memref<48x16xbf16, #tpu.memory_space<vmem>>, vector<16x16xbf16>
    %c32 = arith.constant 32 : index
    %c0_2 = arith.constant 0 : index
    %2 = vector.load %arg2[%c32, %c0_2] : memref<48x16xbf16, #tpu.memory_space<vmem>>, vector<16x16xbf16>
    %c0_3 = arith.constant 0 : index
    %c0_4 = arith.constant 0 : index
    %3 = vector.load %arg3[%c0_3, %c0_4] : memref<1x16xf32, #tpu.memory_space<vmem>>, vector<1x16xf32>
    %c0_5 = arith.constant 0 : index
    %c0_6 = arith.constant 0 : index
    %c0_7 = arith.constant 0 : index
    %4 = vector.load %arg1[%c0_5, %c0_6, %c0_7] : memref<1x144x16xbf16, #tpu.memory_space<vmem>>, vector<1x64x16xbf16>
    %5 = vector.shape_cast %4 : vector<1x64x16xbf16> to vector<64x16xbf16>
    %c0_8 = arith.constant 0 : index
    %c8 = arith.constant 8 : index
    %c0_9 = arith.constant 0 : index
    %6 = vector.load %arg1[%c0_8, %c8, %c0_9] : memref<1x144x16xbf16, #tpu.memory_space<vmem>>, vector<1x64x16xbf16>
    %7 = vector.shape_cast %6 : vector<1x64x16xbf16> to vector<64x16xbf16>
    %c0_10 = arith.constant 0 : index
    %c72 = arith.constant 72 : index
    %c0_11 = arith.constant 0 : index
    %8 = vector.load %arg1[%c0_10, %c72, %c0_11] : memref<1x144x16xbf16, #tpu.memory_space<vmem>>, vector<1x64x16xbf16>
    %9 = vector.shape_cast %8 : vector<1x64x16xbf16> to vector<64x16xbf16>
    %c0_12 = arith.constant 0 : index
    %c80 = arith.constant 80 : index
    %c0_13 = arith.constant 0 : index
    %10 = vector.load %arg1[%c0_12, %c80, %c0_13] : memref<1x144x16xbf16, #tpu.memory_space<vmem>>, vector<1x64x16xbf16>
    %11 = vector.shape_cast %10 : vector<1x64x16xbf16> to vector<64x16xbf16>
    %cst = arith.constant dense<0.000000e+00> : vector<64x16xf32>
    %12 = tpu.matmul %5, %0, %cst {dimension_numbers = #tpu.dot_dimension_numbers<[1], [0], [0], [1], [0, 0, 1, 1], [], []>} : vector<64x16xbf16>, vector<16x16xbf16>, vector<64x16xf32> -> vector<64x16xf32>
    %cst_14 = arith.constant dense<0.000000e+00> : vector<64x16xf32>
    %13 = tpu.matmul %9, %1, %cst_14 {dimension_numbers = #tpu.dot_dimension_numbers<[1], [0], [0], [1], [0, 0, 1, 1], [], []>} : vector<64x16xbf16>, vector<16x16xbf16>, vector<64x16xf32> -> vector<64x16xf32>
    %14 = arith.addf %12, %13 : vector<64x16xf32>
    %cst_15 = arith.constant dense<0.000000e+00> : vector<64x16xf32>
    %15 = tpu.matmul %7, %2, %cst_15 {dimension_numbers = #tpu.dot_dimension_numbers<[1], [0], [0], [1], [0, 0, 1, 1], [], []>} : vector<64x16xbf16>, vector<16x16xbf16>, vector<64x16xf32> -> vector<64x16xf32>
    %16 = arith.addf %14, %15 : vector<64x16xf32>
    %17 = vector.broadcast %3 : vector<1x16xf32> to vector<64x16xf32>
    %18 = arith.addf %16, %17 : vector<64x16xf32>
    %cst_16 = arith.constant dense<0.000000e+00> : vector<64x16xf32>
    %19 = tpu.matmul %9, %0, %cst_16 {dimension_numbers = #tpu.dot_dimension_numbers<[1], [0], [0], [1], [0, 0, 1, 1], [], []>} : vector<64x16xbf16>, vector<16x16xbf16>, vector<64x16xf32> -> vector<64x16xf32>
    %cst_17 = arith.constant dense<0.000000e+00> : vector<64x16xf32>
    %20 = tpu.matmul %7, %1, %cst_17 {dimension_numbers = #tpu.dot_dimension_numbers<[1], [0], [0], [1], [0, 0, 1, 1], [], []>} : vector<64x16xbf16>, vector<16x16xbf16>, vector<64x16xf32> -> vector<64x16xf32>
    %21 = arith.addf %19, %20 : vector<64x16xf32>
    %cst_18 = arith.constant dense<0.000000e+00> : vector<64x16xf32>
    %22 = tpu.matmul %11, %2, %cst_18 {dimension_numbers = #tpu.dot_dimension_numbers<[1], [0], [0], [1], [0, 0, 1, 1], [], []>} : vector<64x16xbf16>, vector<16x16xbf16>, vector<64x16xf32> -> vector<64x16xf32>
    %23 = arith.addf %21, %22 : vector<64x16xf32>
    %24 = vector.broadcast %3 : vector<1x16xf32> to vector<64x16xf32>
    %25 = arith.addf %23, %24 : vector<64x16xf32>
    %26 = arith.maximumf %18, %25 : vector<64x16xf32>
    %cst_19 = arith.constant 0.000000e+00 : f32
    %27 = vector.broadcast %cst_19 : f32 to vector<64x16xf32>
    %28 = arith.maximumf %26, %27 : vector<64x16xf32>
    %29 = arith.truncf %28 : vector<64x16xf32> to vector<64x16xbf16>
    %c0_20 = arith.constant 0 : index
    %c0_21 = arith.constant 0 : index
    %30 = vector.load %arg12[%c0_20, %c0_21] : memref<64x16xbf16, #tpu.memory_space<vmem>>, vector<64x16xbf16>
    tpu.vector_store %arg12[%c0_20, %c0_21], %29 {strides = array<i32>} : memref<64x16xbf16, #tpu.memory_space<vmem>>, vector<64x16xbf16>,
    %c0_22 = arith.constant 0 : index
    %c0_23 = arith.constant 0 : index
    %31 = vector.load %arg12[%c0_22, %c0_23] : memref<64x16xbf16, #tpu.memory_space<vmem>>, vector<64x16xbf16>
    %c0_24 = arith.constant 0 : index
    %c0_25 = arith.constant 0 : index
    %32 = vector.load %arg4[%c0_24, %c0_25] : memref<16x128xbf16, #tpu.memory_space<vmem>>, vector<16x128xbf16>
    %cst_26 = arith.constant dense<0.000000e+00> : vector<64x128xf32>
    %33 = tpu.matmul %31, %32, %cst_26 {dimension_numbers = #tpu.dot_dimension_numbers<[1], [0], [0], [1], [0, 0, 1, 1], [], []>} : vector<64x16xbf16>, vector<16x128xbf16>, vector<64x128xf32> -> vector<64x128xf32>
    %c0_27 = arith.constant 0 : index
    %c0_28 = arith.constant 0 : index
    %34 = vector.load %arg5[%c0_27, %c0_28] : memref<1x128xf32, #tpu.memory_space<vmem>>, vector<1x128xf32>
    %35 = vector.broadcast %34 : vector<1x128xf32> to vector<64x128xf32>
    %36 = arith.addf %33, %35 : vector<64x128xf32>
    %c0_29 = arith.constant 0 : index
    %c0_30 = arith.constant 0 : index
    %37 = vector.load %arg13[%c0_29, %c0_30] : memref<64x128xf32, #tpu.memory_space<vmem>>, vector<64x128xf32>
    tpu.vector_store %arg13[%c0_29, %c0_30], %36 {strides = array<i32>} : memref<64x128xf32, #tpu.memory_space<vmem>>, vector<64x128xf32>,
    %c0_31 = arith.constant 0 : index
    %c0_32 = arith.constant 0 : index
    %38 = vector.load %arg6[%c0_31, %c0_32] : memref<32x128xf32, #tpu.memory_space<vmem>>, vector<32x128xf32>
    %cst_33 = arith.constant 0.000000e+00 : f32
    %39 = vector.broadcast %cst_33 : f32 to vector<8x32xf32>
    %cst_34 = arith.constant 0.000000e+00 : f32
    %40 = vector.broadcast %cst_34 : f32 to vector<8x32xf32>
    %c0_35 = arith.constant 0 : index
    %c0_36 = arith.constant 0 : index
    %41 = vector.load %arg13[%c0_35, %c0_36] : memref<64x128xf32, #tpu.memory_space<vmem>>, vector<8x128xf32>
    %cst_37 = arith.constant dense<0.000000e+00> : vector<8x128xf32>
    %42 = tpu.matmul %39, %38, %cst_37 {dimension_numbers = #tpu.dot_dimension_numbers<[1], [0], [0], [1], [0, 0, 1, 1], [], []>} : vector<8x32xf32>, vector<32x128xf32>, vector<8x128xf32> -> vector<8x128xf32>
    %43 = arith.addf %41, %42 : vector<8x128xf32>
    %cst_38 = arith.constant 5.000000e-01 : f32
    %44 = vector.broadcast %cst_38 : f32 to vector<8x128xf32>
    %45 = arith.mulf %44, %43 : vector<8x128xf32>
    %46 = math.tanh %45 : vector<8x128xf32>
    %cst_39 = arith.constant 5.000000e-01 : f32
    %47 = vector.broadcast %cst_39 : f32 to vector<8x128xf32>
    %48 = arith.mulf %47, %46 : vector<8x128xf32>
    %cst_40 = arith.constant 5.000000e-01 : f32
    %49 = vector.broadcast %cst_40 : f32 to vector<8x128xf32>
    %50 = arith.addf %48, %49 : vector<8x128xf32>
    %51 = vector.extract_strided_slice %50 {offsets = [0, 64], sizes = [8, 32], strides = [1, 1]} : vector<8x128xf32> to vector<8x32xf32>
    %cst_41 = arith.constant 2.000000e+00 : f32
    %52 = vector.broadcast %cst_41 : f32 to vector<8x32xf32>
    %53 = arith.mulf %52, %51 : vector<8x32xf32>
    %cst_42 = arith.constant 1.000000e+00 : f32
    %54 = vector.broadcast %cst_42 : f32 to vector<8x32xf32>
    %55 = arith.subf %53, %54 : vector<8x32xf32>
    %56 = vector.extract_strided_slice %50 {offsets = [0, 32], sizes = [8, 32], strides = [1, 1]} : vector<8x128xf32> to vector<8x32xf32>
    %57 = arith.mulf %56, %40 : vector<8x32xf32>
    %58 = vector.extract_strided_slice %50 {offsets = [0, 0], sizes = [8, 32], strides = [1, 1]} : vector<8x128xf32> to vector<8x32xf32>
    %59 = arith.mulf %58, %55 : vector<8x32xf32>
    %60 = arith.addf %57, %59 : vector<8x32xf32>
    %61 = vector.extract_strided_slice %50 {offsets = [0, 96], sizes = [8, 32], strides = [1, 1]} : vector<8x128xf32> to vector<8x32xf32>
    %62 = math.tanh %60 : vector<8x32xf32>
    %63 = arith.mulf %61, %62 : vector<8x32xf32>
    %c8_43 = arith.constant 8 : index
    %c0_44 = arith.constant 0 : index
    %64 = vector.load %arg13[%c8_43, %c0_44] : memref<64x128xf32, #tpu.memory_space<vmem>>, vector<8x128xf32>
    %cst_45 = arith.constant dense<0.000000e+00> : vector<8x128xf32>
    %65 = tpu.matmul %63, %38, %cst_45 {dimension_numbers = #tpu.dot_dimension_numbers<[1], [0], [0], [1], [0, 0, 1, 1], [], []>} : vector<8x32xf32>, vector<32x128xf32>, vector<8x128xf32> -> vector<8x128xf32>
    %66 = arith.addf %64, %65 : vector<8x128xf32>
    %cst_46 = arith.constant 5.000000e-01 : f32
    %67 = vector.broadcast %cst_46 : f32 to vector<8x128xf32>
    %68 = arith.mulf %67, %66 : vector<8x128xf32>
    %69 = math.tanh %68 : vector<8x128xf32>
    %cst_47 = arith.constant 5.000000e-01 : f32
    %70 = vector.broadcast %cst_47 : f32 to vector<8x128xf32>
    %71 = arith.mulf %70, %69 : vector<8x128xf32>
    %cst_48 = arith.constant 5.000000e-01 : f32
    %72 = vector.broadcast %cst_48 : f32 to vector<8x128xf32>
    %73 = arith.addf %71, %72 : vector<8x128xf32>
    %74 = vector.extract_strided_slice %73 {offsets = [0, 64], sizes = [8, 32], strides = [1, 1]} : vector<8x128xf32> to vector<8x32xf32>
    %cst_49 = arith.constant 2.000000e+00 : f32
    %75 = vector.broadcast %cst_49 : f32 to vector<8x32xf32>
    %76 = arith.mulf %75, %74 : vector<8x32xf32>
    %cst_50 = arith.constant 1.000000e+00 : f32
    %77 = vector.broadcast %cst_50 : f32 to vector<8x32xf32>
    %78 = arith.subf %76, %77 : vector<8x32xf32>
    %79 = vector.extract_strided_slice %73 {offsets = [0, 32], sizes = [8, 32], strides = [1, 1]} : vector<8x128xf32> to vector<8x32xf32>
    %80 = arith.mulf %79, %60 : vector<8x32xf32>
    %81 = vector.extract_strided_slice %73 {offsets = [0, 0], sizes = [8, 32], strides = [1, 1]} : vector<8x128xf32> to vector<8x32xf32>
    %82 = arith.mulf %81, %78 : vector<8x32xf32>
    %83 = arith.addf %80, %82 : vector<8x32xf32>
    %84 = vector.extract_strided_slice %73 {offsets = [0, 96], sizes = [8, 32], strides = [1, 1]} : vector<8x128xf32> to vector<8x32xf32>
    %85 = math.tanh %83 : vector<8x32xf32>
    %86 = arith.mulf %84, %85 : vector<8x32xf32>
    %c16_51 = arith.constant 16 : index
    %c0_52 = arith.constant 0 : index
    %87 = vector.load %arg13[%c16_51, %c0_52] : memref<64x128xf32, #tpu.memory_space<vmem>>, vector<8x128xf32>
    %cst_53 = arith.constant dense<0.000000e+00> : vector<8x128xf32>
    %88 = tpu.matmul %86, %38, %cst_53 {dimension_numbers = #tpu.dot_dimension_numbers<[1], [0], [0], [1], [0, 0, 1, 1], [], []>} : vector<8x32xf32>, vector<32x128xf32>, vector<8x128xf32> -> vector<8x128xf32>
    %89 = arith.addf %87, %88 : vector<8x128xf32>
    %cst_54 = arith.constant 5.000000e-01 : f32
    %90 = vector.broadcast %cst_54 : f32 to vector<8x128xf32>
    %91 = arith.mulf %90, %89 : vector<8x128xf32>
    %92 = math.tanh %91 : vector<8x128xf32>
    %cst_55 = arith.constant 5.000000e-01 : f32
    %93 = vector.broadcast %cst_55 : f32 to vector<8x128xf32>
    %94 = arith.mulf %93, %92 : vector<8x128xf32>
    %cst_56 = arith.constant 5.000000e-01 : f32
    %95 = vector.broadcast %cst_56 : f32 to vector<8x128xf32>
    %96 = arith.addf %94, %95 : vector<8x128xf32>
    %97 = vector.extract_strided_slice %96 {offsets = [0, 64], sizes = [8, 32], strides = [1, 1]} : vector<8x128xf32> to vector<8x32xf32>
    %cst_57 = arith.constant 2.000000e+00 : f32
    %98 = vector.broadcast %cst_57 : f32 to vector<8x32xf32>
    %99 = arith.mulf %98, %97 : vector<8x32xf32>
    %cst_58 = arith.constant 1.000000e+00 : f32
    %100 = vector.broadcast %cst_58 : f32 to vector<8x32xf32>
    %101 = arith.subf %99, %100 : vector<8x32xf32>
    %102 = vector.extract_strided_slice %96 {offsets = [0, 32], sizes = [8, 32], strides = [1, 1]} : vector<8x128xf32> to vector<8x32xf32>
    %103 = arith.mulf %102, %83 : vector<8x32xf32>
    %104 = vector.extract_strided_slice %96 {offsets = [0, 0], sizes = [8, 32], strides = [1, 1]} : vector<8x128xf32> to vector<8x32xf32>
    %105 = arith.mulf %104, %101 : vector<8x32xf32>
    %106 = arith.addf %103, %105 : vector<8x32xf32>
    %107 = vector.extract_strided_slice %96 {offsets = [0, 96], sizes = [8, 32], strides = [1, 1]} : vector<8x128xf32> to vector<8x32xf32>
    %108 = math.tanh %106 : vector<8x32xf32>
    %109 = arith.mulf %107, %108 : vector<8x32xf32>
    %c24 = arith.constant 24 : index
    %c0_59 = arith.constant 0 : index
    %110 = vector.load %arg13[%c24, %c0_59] : memref<64x128xf32, #tpu.memory_space<vmem>>, vector<8x128xf32>
    %cst_60 = arith.constant dense<0.000000e+00> : vector<8x128xf32>
    %111 = tpu.matmul %109, %38, %cst_60 {dimension_numbers = #tpu.dot_dimension_numbers<[1], [0], [0], [1], [0, 0, 1, 1], [], []>} : vector<8x32xf32>, vector<32x128xf32>, vector<8x128xf32> -> vector<8x128xf32>
    %112 = arith.addf %110, %111 : vector<8x128xf32>
    %cst_61 = arith.constant 5.000000e-01 : f32
    %113 = vector.broadcast %cst_61 : f32 to vector<8x128xf32>
    %114 = arith.mulf %113, %112 : vector<8x128xf32>
    %115 = math.tanh %114 : vector<8x128xf32>
    %cst_62 = arith.constant 5.000000e-01 : f32
    %116 = vector.broadcast %cst_62 : f32 to vector<8x128xf32>
    %117 = arith.mulf %116, %115 : vector<8x128xf32>
    %cst_63 = arith.constant 5.000000e-01 : f32
    %118 = vector.broadcast %cst_63 : f32 to vector<8x128xf32>
    %119 = arith.addf %117, %118 : vector<8x128xf32>
    %120 = vector.extract_strided_slice %119 {offsets = [0, 64], sizes = [8, 32], strides = [1, 1]} : vector<8x128xf32> to vector<8x32xf32>
    %cst_64 = arith.constant 2.000000e+00 : f32
    %121 = vector.broadcast %cst_64 : f32 to vector<8x32xf32>
    %122 = arith.mulf %121, %120 : vector<8x32xf32>
    %cst_65 = arith.constant 1.000000e+00 : f32
    %123 = vector.broadcast %cst_65 : f32 to vector<8x32xf32>
    %124 = arith.subf %122, %123 : vector<8x32xf32>
    %125 = vector.extract_strided_slice %119 {offsets = [0, 32], sizes = [8, 32], strides = [1, 1]} : vector<8x128xf32> to vector<8x32xf32>
    %126 = arith.mulf %125, %106 : vector<8x32xf32>
    %127 = vector.extract_strided_slice %119 {offsets = [0, 0], sizes = [8, 32], strides = [1, 1]} : vector<8x128xf32> to vector<8x32xf32>
    %128 = arith.mulf %127, %124 : vector<8x32xf32>
    %129 = arith.addf %126, %128 : vector<8x32xf32>
    %130 = vector.extract_strided_slice %119 {offsets = [0, 96], sizes = [8, 32], strides = [1, 1]} : vector<8x128xf32> to vector<8x32xf32>
    %131 = math.tanh %129 : vector<8x32xf32>
    %132 = arith.mulf %130, %131 : vector<8x32xf32>
    %c32_66 = arith.constant 32 : index
    %c0_67 = arith.constant 0 : index
    %133 = vector.load %arg13[%c32_66, %c0_67] : memref<64x128xf32, #tpu.memory_space<vmem>>, vector<8x128xf32>
    %cst_68 = arith.constant dense<0.000000e+00> : vector<8x128xf32>
    %134 = tpu.matmul %132, %38, %cst_68 {dimension_numbers = #tpu.dot_dimension_numbers<[1], [0], [0], [1], [0, 0, 1, 1], [], []>} : vector<8x32xf32>, vector<32x128xf32>, vector<8x128xf32> -> vector<8x128xf32>
    %135 = arith.addf %133, %134 : vector<8x128xf32>
    %cst_69 = arith.constant 5.000000e-01 : f32
    %136 = vector.broadcast %cst_69 : f32 to vector<8x128xf32>
    %137 = arith.mulf %136, %135 : vector<8x128xf32>
    %138 = math.tanh %137 : vector<8x128xf32>
    %cst_70 = arith.constant 5.000000e-01 : f32
    %139 = vector.broadcast %cst_70 : f32 to vector<8x128xf32>
    %140 = arith.mulf %139, %138 : vector<8x128xf32>
    %cst_71 = arith.constant 5.000000e-01 : f32
    %141 = vector.broadcast %cst_71 : f32 to vector<8x128xf32>
    %142 = arith.addf %140, %141 : vector<8x128xf32>
    %143 = vector.extract_strided_slice %142 {offsets = [0, 64], sizes = [8, 32], strides = [1, 1]} : vector<8x128xf32> to vector<8x32xf32>
    %cst_72 = arith.constant 2.000000e+00 : f32
    %144 = vector.broadcast %cst_72 : f32 to vector<8x32xf32>
    %145 = arith.mulf %144, %143 : vector<8x32xf32>
    %cst_73 = arith.constant 1.000000e+00 : f32
    %146 = vector.broadcast %cst_73 : f32 to vector<8x32xf32>
    %147 = arith.subf %145, %146 : vector<8x32xf32>
    %148 = vector.extract_strided_slice %142 {offsets = [0, 32], sizes = [8, 32], strides = [1, 1]} : vector<8x128xf32> to vector<8x32xf32>
    %149 = arith.mulf %148, %129 : vector<8x32xf32>
    %150 = vector.extract_strided_slice %142 {offsets = [0, 0], sizes = [8, 32], strides = [1, 1]} : vector<8x128xf32> to vector<8x32xf32>
    %151 = arith.mulf %150, %147 : vector<8x32xf32>
    %152 = arith.addf %149, %151 : vector<8x32xf32>
    %153 = vector.extract_strided_slice %142 {offsets = [0, 96], sizes = [8, 32], strides = [1, 1]} : vector<8x128xf32> to vector<8x32xf32>
    %154 = math.tanh %152 : vector<8x32xf32>
    %155 = arith.mulf %153, %154 : vector<8x32xf32>
    %c40 = arith.constant 40 : index
    %c0_74 = arith.constant 0 : index
    %156 = vector.load %arg13[%c40, %c0_74] : memref<64x128xf32, #tpu.memory_space<vmem>>, vector<8x128xf32>
    %cst_75 = arith.constant dense<0.000000e+00> : vector<8x128xf32>
    %157 = tpu.matmul %155, %38, %cst_75 {dimension_numbers = #tpu.dot_dimension_numbers<[1], [0], [0], [1], [0, 0, 1, 1], [], []>} : vector<8x32xf32>, vector<32x128xf32>, vector<8x128xf32> -> vector<8x128xf32>
    %158 = arith.addf %156, %157 : vector<8x128xf32>
    %cst_76 = arith.constant 5.000000e-01 : f32
    %159 = vector.broadcast %cst_76 : f32 to vector<8x128xf32>
    %160 = arith.mulf %159, %158 : vector<8x128xf32>
    %161 = math.tanh %160 : vector<8x128xf32>
    %cst_77 = arith.constant 5.000000e-01 : f32
    %162 = vector.broadcast %cst_77 : f32 to vector<8x128xf32>
    %163 = arith.mulf %162, %161 : vector<8x128xf32>
    %cst_78 = arith.constant 5.000000e-01 : f32
    %164 = vector.broadcast %cst_78 : f32 to vector<8x128xf32>
    %165 = arith.addf %163, %164 : vector<8x128xf32>
    %166 = vector.extract_strided_slice %165 {offsets = [0, 64], sizes = [8, 32], strides = [1, 1]} : vector<8x128xf32> to vector<8x32xf32>
    %cst_79 = arith.constant 2.000000e+00 : f32
    %167 = vector.broadcast %cst_79 : f32 to vector<8x32xf32>
    %168 = arith.mulf %167, %166 : vector<8x32xf32>
    %cst_80 = arith.constant 1.000000e+00 : f32
    %169 = vector.broadcast %cst_80 : f32 to vector<8x32xf32>
    %170 = arith.subf %168, %169 : vector<8x32xf32>
    %171 = vector.extract_strided_slice %165 {offsets = [0, 32], sizes = [8, 32], strides = [1, 1]} : vector<8x128xf32> to vector<8x32xf32>
    %172 = arith.mulf %171, %152 : vector<8x32xf32>
    %173 = vector.extract_strided_slice %165 {offsets = [0, 0], sizes = [8, 32], strides = [1, 1]} : vector<8x128xf32> to vector<8x32xf32>
    %174 = arith.mulf %173, %170 : vector<8x32xf32>
    %175 = arith.addf %172, %174 : vector<8x32xf32>
    %176 = vector.extract_strided_slice %165 {offsets = [0, 96], sizes = [8, 32], strides = [1, 1]} : vector<8x128xf32> to vector<8x32xf32>
    %177 = math.tanh %175 : vector<8x32xf32>
    %178 = arith.mulf %176, %177 : vector<8x32xf32>
    %c48 = arith.constant 48 : index
    %c0_81 = arith.constant 0 : index
    %179 = vector.load %arg13[%c48, %c0_81] : memref<64x128xf32, #tpu.memory_space<vmem>>, vector<8x128xf32>
    %cst_82 = arith.constant dense<0.000000e+00> : vector<8x128xf32>
    %180 = tpu.matmul %178, %38, %cst_82 {dimension_numbers = #tpu.dot_dimension_numbers<[1], [0], [0], [1], [0, 0, 1, 1], [], []>} : vector<8x32xf32>, vector<32x128xf32>, vector<8x128xf32> -> vector<8x128xf32>
    %181 = arith.addf %179, %180 : vector<8x128xf32>
    %cst_83 = arith.constant 5.000000e-01 : f32
    %182 = vector.broadcast %cst_83 : f32 to vector<8x128xf32>
    %183 = arith.mulf %182, %181 : vector<8x128xf32>
    %184 = math.tanh %183 : vector<8x128xf32>
    %cst_84 = arith.constant 5.000000e-01 : f32
    %185 = vector.broadcast %cst_84 : f32 to vector<8x128xf32>
    %186 = arith.mulf %185, %184 : vector<8x128xf32>
    %cst_85 = arith.constant 5.000000e-01 : f32
    %187 = vector.broadcast %cst_85 : f32 to vector<8x128xf32>
    %188 = arith.addf %186, %187 : vector<8x128xf32>
    %189 = vector.extract_strided_slice %188 {offsets = [0, 64], sizes = [8, 32], strides = [1, 1]} : vector<8x128xf32> to vector<8x32xf32>
    %cst_86 = arith.constant 2.000000e+00 : f32
    %190 = vector.broadcast %cst_86 : f32 to vector<8x32xf32>
    %191 = arith.mulf %190, %189 : vector<8x32xf32>
    %cst_87 = arith.constant 1.000000e+00 : f32
    %192 = vector.broadcast %cst_87 : f32 to vector<8x32xf32>
    %193 = arith.subf %191, %192 : vector<8x32xf32>
    %194 = vector.extract_strided_slice %188 {offsets = [0, 32], sizes = [8, 32], strides = [1, 1]} : vector<8x128xf32> to vector<8x32xf32>
    %195 = arith.mulf %194, %175 : vector<8x32xf32>
    %196 = vector.extract_strided_slice %188 {offsets = [0, 0], sizes = [8, 32], strides = [1, 1]} : vector<8x128xf32> to vector<8x32xf32>
    %197 = arith.mulf %196, %193 : vector<8x32xf32>
    %198 = arith.addf %195, %197 : vector<8x32xf32>
    %199 = vector.extract_strided_slice %188 {offsets = [0, 96], sizes = [8, 32], strides = [1, 1]} : vector<8x128xf32> to vector<8x32xf32>
    %200 = math.tanh %198 : vector<8x32xf32>
    %201 = arith.mulf %199, %200 : vector<8x32xf32>
    %c56 = arith.constant 56 : index
    %c0_88 = arith.constant 0 : index
    %202 = vector.load %arg13[%c56, %c0_88] : memref<64x128xf32, #tpu.memory_space<vmem>>, vector<8x128xf32>
    %cst_89 = arith.constant dense<0.000000e+00> : vector<8x128xf32>
    %203 = tpu.matmul %201, %38, %cst_89 {dimension_numbers = #tpu.dot_dimension_numbers<[1], [0], [0], [1], [0, 0, 1, 1], [], []>} : vector<8x32xf32>, vector<32x128xf32>, vector<8x128xf32> -> vector<8x128xf32>
    %204 = arith.addf %202, %203 : vector<8x128xf32>
    %cst_90 = arith.constant 5.000000e-01 : f32
    %205 = vector.broadcast %cst_90 : f32 to vector<8x128xf32>
    %206 = arith.mulf %205, %204 : vector<8x128xf32>
    %207 = math.tanh %206 : vector<8x128xf32>
    %cst_91 = arith.constant 5.000000e-01 : f32
    %208 = vector.broadcast %cst_91 : f32 to vector<8x128xf32>
    %209 = arith.mulf %208, %207 : vector<8x128xf32>
    %cst_92 = arith.constant 5.000000e-01 : f32
    %210 = vector.broadcast %cst_92 : f32 to vector<8x128xf32>
    %211 = arith.addf %209, %210 : vector<8x128xf32>
    %212 = vector.extract_strided_slice %211 {offsets = [0, 64], sizes = [8, 32], strides = [1, 1]} : vector<8x128xf32> to vector<8x32xf32>
    %cst_93 = arith.constant 2.000000e+00 : f32
    %213 = vector.broadcast %cst_93 : f32 to vector<8x32xf32>
    %214 = arith.mulf %213, %212 : vector<8x32xf32>
    %cst_94 = arith.constant 1.000000e+00 : f32
    %215 = vector.broadcast %cst_94 : f32 to vector<8x32xf32>
    %216 = arith.subf %214, %215 : vector<8x32xf32>
    %217 = vector.extract_strided_slice %211 {offsets = [0, 32], sizes = [8, 32], strides = [1, 1]} : vector<8x128xf32> to vector<8x32xf32>
    %218 = arith.mulf %217, %198 : vector<8x32xf32>
    %219 = vector.extract_strided_slice %211 {offsets = [0, 0], sizes = [8, 32], strides = [1, 1]} : vector<8x128xf32> to vector<8x32xf32>
    %220 = arith.mulf %219, %216 : vector<8x32xf32>
    %221 = arith.addf %218, %220 : vector<8x32xf32>
    %222 = vector.extract_strided_slice %211 {offsets = [0, 96], sizes = [8, 32], strides = [1, 1]} : vector<8x128xf32> to vector<8x32xf32>
    %223 = math.tanh %221 : vector<8x32xf32>
    %224 = arith.mulf %222, %223 : vector<8x32xf32>
    %c56_95 = arith.constant 56 : index
    %c0_96 = arith.constant 0 : index
    %225 = vector.load %arg12[%c56_95, %c0_96] : memref<64x16xbf16, #tpu.memory_space<vmem>>, vector<8x16xbf16>
    %c0_97 = arith.constant 0 : index
    %c0_98 = arith.constant 0 : index
    %226 = vector.load %arg7[%c0_97, %c0_98] : memref<16x128xbf16, #tpu.memory_space<vmem>>, vector<16x128xbf16>
    %cst_99 = arith.constant dense<0.000000e+00> : vector<8x128xf32>
    %227 = tpu.matmul %225, %226, %cst_99 {dimension_numbers = #tpu.dot_dimension_numbers<[1], [0], [0], [1], [0, 0, 1, 1], [], []>} : vector<8x16xbf16>, vector<16x128xbf16>, vector<8x128xf32> -> vector<8x128xf32>
    %c0_100 = arith.constant 0 : index
    %c0_101 = arith.constant 0 : index
    %228 = vector.load %arg8[%c0_100, %c0_101] : memref<1x128xf32, #tpu.memory_space<vmem>>, vector<1x128xf32>
    %229 = vector.broadcast %228 : vector<1x128xf32> to vector<8x128xf32>
    %230 = arith.addf %227, %229 : vector<8x128xf32>
    %cst_102 = arith.constant 5.000000e-01 : f32
    %231 = vector.broadcast %cst_102 : f32 to vector<8x128xf32>
    %232 = arith.mulf %231, %230 : vector<8x128xf32>
    %233 = math.tanh %232 : vector<8x128xf32>
    %cst_103 = arith.constant 5.000000e-01 : f32
    %234 = vector.broadcast %cst_103 : f32 to vector<8x128xf32>
    %235 = arith.mulf %234, %233 : vector<8x128xf32>
    %cst_104 = arith.constant 5.000000e-01 : f32
    %236 = vector.broadcast %cst_104 : f32 to vector<8x128xf32>
    %237 = arith.addf %235, %236 : vector<8x128xf32>
    %238 = vector.extract_strided_slice %237 {offsets = [0, 64], sizes = [8, 32], strides = [1, 1]} : vector<8x128xf32> to vector<8x32xf32>
    %cst_105 = arith.constant 2.000000e+00 : f32
    %239 = vector.broadcast %cst_105 : f32 to vector<8x32xf32>
    %240 = arith.mulf %239, %238 : vector<8x32xf32>
    %cst_106 = arith.constant 1.000000e+00 : f32
    %241 = vector.broadcast %cst_106 : f32 to vector<8x32xf32>
    %242 = arith.subf %240, %241 : vector<8x32xf32>
    %243 = vector.extract_strided_slice %237 {offsets = [0, 96], sizes = [8, 32], strides = [1, 1]} : vector<8x128xf32> to vector<8x32xf32>
    %244 = vector.extract_strided_slice %237 {offsets = [0, 0], sizes = [8, 32], strides = [1, 1]} : vector<8x128xf32> to vector<8x32xf32>
    %245 = arith.mulf %244, %242 : vector<8x32xf32>
    %246 = math.tanh %245 : vector<8x32xf32>
    %247 = arith.mulf %243, %246 : vector<8x32xf32>
    %248 = tpu.concatenate %224, %247 in 1 : vector<8x32xf32>, vector<8x32xf32> -> vector<8x64xf32>
    %249 = arith.truncf %248 : vector<8x64xf32> to vector<8x64xbf16>
    %c0_107 = arith.constant 0 : index
    %c0_108 = arith.constant 0 : index
    %250 = vector.load %arg9[%c0_107, %c0_108] : memref<64x640xbf16, #tpu.memory_space<vmem>>, vector<64x640xbf16>
    %cst_109 = arith.constant dense<0.000000e+00> : vector<8x640xf32>
    %251 = tpu.matmul %249, %250, %cst_109 {dimension_numbers = #tpu.dot_dimension_numbers<[1], [0], [0], [1], [0, 0, 1, 1], [], []>} : vector<8x64xbf16>, vector<64x640xbf16>, vector<8x640xf32> -> vector<8x640xf32>
    %c0_110 = arith.constant 0 : index
    %c0_111 = arith.constant 0 : index
    %252 = vector.load %arg10[%c0_110, %c0_111] : memref<1x640xf32, #tpu.memory_space<vmem>>, vector<1x640xf32>
    %253 = vector.broadcast %252 : vector<1x640xf32> to vector<8x640xf32>
    %254 = arith.addf %251, %253 : vector<8x640xf32>
    %cst_112 = arith.constant 5.000000e-01 : f32
    %255 = vector.broadcast %cst_112 : f32 to vector<8x640xf32>
    %256 = arith.mulf %255, %254 : vector<8x640xf32>
    %257 = math.tanh %256 : vector<8x640xf32>
    %cst_113 = arith.constant 5.000000e-01 : f32
    %258 = vector.broadcast %cst_113 : f32 to vector<8x640xf32>
    %259 = arith.mulf %258, %257 : vector<8x640xf32>
    %cst_114 = arith.constant 5.000000e-01 : f32
    %260 = vector.broadcast %cst_114 : f32 to vector<8x640xf32>
    %261 = arith.addf %259, %260 : vector<8x640xf32>
    %c0_115 = arith.constant 0 : index
    %c0_116 = arith.constant 0 : index
    %c0_117 = arith.constant 0 : index
    %262 = vector.load %arg11[%c0_115, %c0_116, %c0_117] : memref<1x8x640xf32, #tpu.memory_space<vmem>>, vector<1x8x640xf32>
    %263 = vector.shape_cast %262 : vector<1x8x640xf32> to vector<8x640xf32>
    %264 = vector.shape_cast %261 : vector<8x640xf32> to vector<1x8x640xf32>
    tpu.vector_store %arg11[%c0_115, %c0_116, %c0_117], %264 {strides = array<i32>} : memref<1x8x640xf32, #tpu.memory_space<vmem>>, vector<1x8x640xf32>,
    return
  }
  func.func @transform_0(%arg0: i32) -> (i32, i32, i32) {
    %c0_i32 = arith.constant 0 : i32
    %c0_i32_0 = arith.constant 0 : i32
    %c0_i32_1 = arith.constant 0 : i32
    return %arg0, %c0_i32, %c0_i32_0 : i32, i32, i32
  }
  func.func @transform_1(%arg0: i32) -> (i32, i32) {
    %c0_i32 = arith.constant 0 : i32
    %c0_i32_0 = arith.constant 0 : i32
    %c0_i32_1 = arith.constant 0 : i32
    return %c0_i32, %c0_i32_0 : i32, i32
  }
  func.func @transform_2(%arg0: i32) -> (i32, i32) {
    %c0_i32 = arith.constant 0 : i32
    %c0_i32_0 = arith.constant 0 : i32
    %c0_i32_1 = arith.constant 0 : i32
    return %c0_i32, %c0_i32_0 : i32, i32
  }
  func.func @transform_3(%arg0: i32) -> (i32, i32) {
    %c0_i32 = arith.constant 0 : i32
    %c0_i32_0 = arith.constant 0 : i32
    %c0_i32_1 = arith.constant 0 : i32
    return %c0_i32, %c0_i32_0 : i32, i32
  }
  func.func @transform_4(%arg0: i32) -> (i32, i32) {
    %c0_i32 = arith.constant 0 : i32
    %c0_i32_0 = arith.constant 0 : i32
    %c0_i32_1 = arith.constant 0 : i32
    return %c0_i32, %c0_i32_0 : i32, i32
  }
  func.func @transform_5(%arg0: i32) -> (i32, i32) {
    %c0_i32 = arith.constant 0 : i32
    %c0_i32_0 = arith.constant 0 : i32
    %c0_i32_1 = arith.constant 0 : i32
    return %c0_i32, %c0_i32_0 : i32, i32
  }
  func.func @transform_6(%arg0: i32) -> (i32, i32) {
    %c0_i32 = arith.constant 0 : i32
    %c0_i32_0 = arith.constant 0 : i32
    %c0_i32_1 = arith.constant 0 : i32
    return %c0_i32, %c0_i32_0 : i32, i32
  }
  func.func @transform_7(%arg0: i32) -> (i32, i32) {
    %c0_i32 = arith.constant 0 : i32
    %c0_i32_0 = arith.constant 0 : i32
    %c0_i32_1 = arith.constant 0 : i32
    return %c0_i32, %c0_i32_0 : i32, i32
  }
  func.func @transform_8(%arg0: i32) -> (i32, i32) {
    %c0_i32 = arith.constant 0 : i32
    %c0_i32_0 = arith.constant 0 : i32
    %c0_i32_1 = arith.constant 0 : i32
    return %c0_i32, %c0_i32_0 : i32, i32
  }
  func.func @transform_9(%arg0: i32) -> (i32, i32) {
    %c0_i32 = arith.constant 0 : i32
    %c0_i32_0 = arith.constant 0 : i32
    %c0_i32_1 = arith.constant 0 : i32
    return %c0_i32, %c0_i32_0 : i32, i32
  }
  func.func @transform_10(%arg0: i32) -> (i32, i32, i32) {
    %c0_i32 = arith.constant 0 : i32
    %c0_i32_0 = arith.constant 0 : i32
    %c0_i32_1 = arith.constant 0 : i32
    return %arg0, %c0_i32, %c0_i32_0 : i32, i32, i32
  }
}

</mosaic_0001>

<llo_original>
// kernel: lstm_momentum_forward.1
$region0: #{lstm_momentum_forward.1}
  #allocation0 [shape = 'u32[]', space=smem, size = 0x4, offset = 0x4, fixed_abs, tag = 'smem constant byte address 0x4 - core index']
  #allocation1 [shape = 'u32[144,128]{1,0:T(1,128)}', space=vmem, size = 0x12000, scoped, tag = 'internal scratch']
  #allocation2 [shape = 'bf16[64,16]{1,0:T(8,128)(2,1)}', space=vmem, size = 0x4000, scoped, tag = 'scratch operand']
  #allocation3 [shape = 'f32[64,128]{1,0:T(8,128)}', space=vmem, size = 0x8000, scoped, tag = 'scratch operand']
  %s0 = inlined_call_operand.vmem [shape: bf16[1,144,16], index: 0, kind: input, shape index: {}]
  %s1 = inlined_call_operand.vmem [shape: bf16[48,16], index: 1, kind: input, shape index: {}]
  %s2 = inlined_call_operand.vmem [shape: f32[1,16], index: 2, kind: input, shape index: {}]
  %s3 = inlined_call_operand.vmem [shape: bf16[16,128], index: 3, kind: input, shape index: {}]
  %s4 = inlined_call_operand.vmem [shape: f32[1,128], index: 4, kind: input, shape index: {}]
  %s5 = inlined_call_operand.vmem [shape: f32[32,128], index: 5, kind: input, shape index: {}]
  %s6 = inlined_call_operand.vmem [shape: bf16[16,128], index: 6, kind: input, shape index: {}]
  %s7 = inlined_call_operand.vmem [shape: f32[1,128], index: 7, kind: input, shape index: {}]
  %s8 = inlined_call_operand.vmem [shape: bf16[64,640], index: 8, kind: input, shape index: {}]
  %s9 = inlined_call_operand.vmem [shape: f32[1,640], index: 9, kind: input, shape index: {}]
  %s10 = inlined_call_operand.vmem [shape: f32[1,8,640], index: 10, kind: output, shape index: {}]
  %s11 = sld [smem:[#allocation0]]
  $region50: #{lstm_momentum_forward.1} parent=0
    _
  %s13 = ssub.s32 1, %s11
  %s14 = scalar_select 0, %s13, %s11
  // Predicated region
  $region2: #{lstm_momentum_forward.1} parent=0 // pred_check
    _
  $region3: #{lstm_momentum_forward.1} parent=0 // pred_check_branch
    %16 = sbr.rel (0) target = $region5
  $region4: #{lstm_momentum_forward.1} parent=0 // pred_region
    _
  $region5: #{lstm_momentum_forward.1} parent=0 // pred_fallthru
    _
  // Predicated region
  $region6: #{lstm_momentum_forward.1} parent=0 // pred_check
    _
  $region7: #{lstm_momentum_forward.1} parent=0 // pred_check_branch
    %18 = sbr.rel (0) target = $region9
  $region8: #{lstm_momentum_forward.1} parent=0 // pred_region
    _
  $region9: #{lstm_momentum_forward.1} parent=0 // pred_fallthru
    _
  // Predicated region
  $region10: #{lstm_momentum_forward.1} parent=0 // pred_check
    _
  $region11: #{lstm_momentum_forward.1} parent=0 // pred_check_branch
    %20 = sbr.rel (0) target = $region13
  $region12: #{lstm_momentum_forward.1} parent=0 // pred_region
    _
  $region13: #{lstm_momentum_forward.1} parent=0 // pred_fallthru
    _
  // Predicated region
  $region14: #{lstm_momentum_forward.1} parent=0 // pred_check
    _
  $region15: #{lstm_momentum_forward.1} parent=0 // pred_check_branch
    %22 = sbr.rel (0) target = $region17
  $region16: #{lstm_momentum_forward.1} parent=0 // pred_region
    _
  $region17: #{lstm_momentum_forward.1} parent=0 // pred_fallthru
    _
  // Predicated region
  $region18: #{lstm_momentum_forward.1} parent=0 // pred_check
    _
  $region19: #{lstm_momentum_forward.1} parent=0 // pred_check_branch
    %24 = sbr.rel (0) target = $region21
  $region20: #{lstm_momentum_forward.1} parent=0 // pred_region
    _
  $region21: #{lstm_momentum_forward.1} parent=0 // pred_fallthru
    _
  // Predicated region
  $region22: #{lstm_momentum_forward.1} parent=0 // pred_check
    _
  $region23: #{lstm_momentum_forward.1} parent=0 // pred_check_branch
    %26 = sbr.rel (0) target = $region25
  $region24: #{lstm_momentum_forward.1} parent=0 // pred_region
    _
  $region25: #{lstm_momentum_forward.1} parent=0 // pred_fallthru
    _
  // Predicated region
  $region26: #{lstm_momentum_forward.1} parent=0 // pred_check
    _
  $region27: #{lstm_momentum_forward.1} parent=0 // pred_check_branch
    %28 = sbr.rel (0) target = $region29
  $region28: #{lstm_momentum_forward.1} parent=0 // pred_region
    _
  $region29: #{lstm_momentum_forward.1} parent=0 // pred_fallthru
    _
  // Predicated region
  $region30: #{lstm_momentum_forward.1} parent=0 // pred_check
    _
  $region31: #{lstm_momentum_forward.1} parent=0 // pred_check_branch
    %30 = sbr.rel (0) target = $region33
  $region32: #{lstm_momentum_forward.1} parent=0 // pred_region
    _
  $region33: #{lstm_momentum_forward.1} parent=0 // pred_fallthru
    _
  // Predicated region
  $region34: #{lstm_momentum_forward.1} parent=0 // pred_check
    _
  $region35: #{lstm_momentum_forward.1} parent=0 // pred_check_branch
    %32 = sbr.rel (0) target = $region37
  $region36: #{lstm_momentum_forward.1} parent=0 // pred_region
    _
  $region37: #{lstm_momentum_forward.1} parent=0 // pred_fallthru
    _
  // Predicated region
  $region38: #{lstm_momentum_forward.1} parent=0 // pred_check
    _
  $region39: #{lstm_momentum_forward.1} parent=0 // pred_check_branch
    %34 = sbr.rel (0) target = $region41
  $region40: #{lstm_momentum_forward.1} parent=0 // pred_region
    _
  $region41: #{lstm_momentum_forward.1} parent=0 // pred_fallthru
    _
  %v36 = vld [vmem:[%s1] sm:$0xf]
  %v37 = vld [vmem:[%s1 + $0x4] sm:$0xf]
  %v38 = vld [vmem:[%s1 + $0x8] sm:$0xf]
  %v39 = vld [vmem:[%s1 + $0xc] sm:$0xf]
  %v40 = vld [vmem:[%s1 + $0x10] sm:$0xf]
  %v41 = vld [vmem:[%s1 + $0x14] sm:$0xf]
  %v42 = vld [vmem:[%s2] sm:$0x1]
  %v43 = vld [vmem:[%s0] sm:$0xf]
  %v44 = vld [vmem:[%s0 + $0x4] sm:$0xf]
  %v45 = vld [vmem:[%s0 + $0x8] sm:$0xf]
  %v46 = vld [vmem:[%s0 + $0xc] sm:$0xf]
  %v47 = vld [vmem:[%s0 + $0x10] sm:$0xf]
  %v48 = vld [vmem:[%s0 + $0x14] sm:$0xf]
  %v49 = vld [vmem:[%s0 + $0x18] sm:$0xf]
  %v50 = vld [vmem:[%s0 + $0x1c] sm:$0xf]
  %v51 = vld [vmem:[%s0 + $0x20] sm:$0xf]
  %v52 = vld [vmem:[%s0 + $0x24] sm:$0xf]
  %v53 = vld [vmem:[%s0 + $0x28] sm:$0xf]
  %v54 = vld [vmem:[%s0 + $0x2c] sm:$0xf]
  %v55 = vld [vmem:[%s0 + $0x30] sm:$0xf]
  %v56 = vld [vmem:[%s0 + $0x34] sm:$0xf]
  %v57 = vld [vmem:[%s0 + $0x38] sm:$0xf]
  %v58 = vld [vmem:[%s0 + $0x3c] sm:$0xf]
  %v59 = vld [vmem:[%s0 + $0x40] sm:$0xf]
  %v60 = vld [vmem:[%s0 + $0x44] sm:$0xf]
  %v69 = vunpack.c.l.b16 %v52
  %v70 = vunpack.c.l.b16 %v53
  %v71 = vunpack.c.l.b16 %v54
  %v72 = vunpack.c.l.b16 %v55
  %v73 = vunpack.c.l.b16 %v56
  %v74 = vunpack.c.l.b16 %v57
  %v75 = vunpack.c.l.b16 %v58
  %v76 = vunpack.c.l.b16 %v59
  %v77 = vpack.c.b16 %v70, %v69
  %v78 = vpack.c.b16 %v72, %v71
  %v79 = vpack.c.b16 %v74, %v73
  %v80 = vpack.c.b16 %v76, %v75
  %v83 = vunpack.c.l.b16 %v38
  %v84 = vunpack.c.l.b16 %v39
  %v85 = vpack.c.b16 %v84, %v83
  %vm87 = vcmask 130048
  %v89 = vsel %vm87, %v77, 0
  %v92 = vsel %vm87, %v78, 0
  %v95 = vsel %vm87, %v79, 0
  %v98 = vsel %vm87, %v80, 0
  %100 = vmatprep.subr.bf16.mxu0 0
  %101 = vmatpush1.bf16.msra.mxu0 0
  %102 = vmatprep.subr.bf16.mxu0 0
  %103 = vmatpush1.bf16.msra.mxu0 0
  %104 = vmatprep.subr.bf16.mxu0 0
  %105 = vmatpush1.bf16.msra.mxu0 0
  %106 = vmatprep.subr.bf16.mxu0 0
  %107 = vmatpush1.bf16.msra.mxu0 0
  %108 = vmatprep.subr.bf16.mxu0 0
  %109 = vmatpush1.bf16.msra.mxu0 0
  %110 = vmatprep.subr.bf16.mxu0 0
  %111 = vmatpush1.bf16.msra.mxu0 0
  %112 = vmatprep.subr.bf16.mxu0 0
  %113 = vmatpush1.bf16.msra.mxu0 0
  %114 = vmatprep.subr.bf16.mxu0 0
  %115 = vmatpush1.bf16.msra.mxu0 %v85
  %116 = vmatprep.subr.bf16.mxu0 0
  %117 = vmatpush2.bf16.msra.mxu0 0
  %118 = vmatprep.subr.bf16.mxu0 0
  %119 = vmatpush2.bf16.msra.mxu0 0
  %120 = vmatprep.subr.bf16.mxu0 0
  %121 = vmatpush2.bf16.msra.mxu0 0
  %122 = vmatprep.subr.bf16.mxu0 0
  %123 = vmatpush2.bf16.msra.mxu0 0
  %124 = vmatprep.subr.bf16.mxu0 0
  %125 = vmatpush2.bf16.msra.mxu0 0
  %126 = vmatprep.subr.bf16.mxu0 0
  %127 = vmatpush2.bf16.msra.mxu0 0
  %128 = vmatprep.subr.bf16.mxu0 0
  %129 = vmatpush2.bf16.msra.mxu0 0
  %130 = vmatprep.subr.bf16.mxu0 0
  %131 = vmatpush2.bf16.msra.mxu0 0
  %132 = vmatprep.mubr.bf16.mxu0 0
  %133 = vmatmul.mubr.bf16.gmra.mxu0 %v89
  %v134 = vpop.f32.mrf.mxu0
  %v135 = vadd.f32 0.0, %v134
  %v136 = vpop.f32.mrf.mxu0
  %v137 = vpop.f32.mrf.mxu0
  %v138 = vadd.f32 0.0, %v137
  %v139 = vpop.f32.mrf.mxu0
  %140 = vmatprep.mubr.bf16.mxu0 0
  %141 = vmatmul.mubr.bf16.gmra.mxu0 %v92
  %v142 = vpop.f32.mrf.mxu0
  %v143 = vadd.f32 0.0, %v142
  %v144 = vpop.f32.mrf.mxu0
  %v145 = vpop.f32.mrf.mxu0
  %v146 = vadd.f32 0.0, %v145
  %v147 = vpop.f32.mrf.mxu0
  %148 = vmatprep.mubr.bf16.mxu0 0
  %149 = vmatmul.mubr.bf16.gmra.mxu0 %v95
  %v150 = vpop.f32.mrf.mxu0
  %v151 = vadd.f32 0.0, %v150
  %v152 = vpop.f32.mrf.mxu0
  %v153 = vpop.f32.mrf.mxu0
  %v154 = vadd.f32 0.0, %v153
  %v155 = vpop.f32.mrf.mxu0
  %156 = vmatprep.mubr.bf16.mxu0 0
  %157 = vmatmul.mubr.bf16.gmra.mxu0 %v98
  %v158 = vpop.f32.mrf.mxu0
  %v159 = vadd.f32 0.0, %v158
  %v160 = vpop.f32.mrf.mxu0
  %v161 = vpop.f32.mrf.mxu0
  %v162 = vadd.f32 0.0, %v161
  %v163 = vpop.f32.mrf.mxu0
  %164 = vdwg.mxu0
  %v173 = vunpack.c.l.b16 %v43
  %v174 = vunpack.c.l.b16 %v44
  %v175 = vunpack.c.l.b16 %v45
  %v176 = vunpack.c.l.b16 %v46
  %v177 = vunpack.c.l.b16 %v47
  %v178 = vunpack.c.l.b16 %v48
  %v179 = vunpack.c.l.b16 %v49
  %v180 = vunpack.c.l.b16 %v50
  %v181 = vpack.c.b16 %v174, %v173
  %v182 = vpack.c.b16 %v176, %v175
  %v183 = vpack.c.b16 %v178, %v177
  %v184 = vpack.c.b16 %v180, %v179
  %v187 = vunpack.c.l.b16 %v36
  %v188 = vunpack.c.l.b16 %v37
  %v189 = vpack.c.b16 %v188, %v187
  %v192 = vsel %vm87, %v181, 0
  %v195 = vsel %vm87, %v182, 0
  %v198 = vsel %vm87, %v183, 0
  %v201 = vsel %vm87, %v184, 0
  %203 = vmatprep.subr.bf16.mxu0 0
  %204 = vmatpush1.bf16.msra.mxu0 0
  %205 = vmatprep.subr.bf16.mxu0 0
  %206 = vmatpush1.bf16.msra.mxu0 0
  %207 = vmatprep.subr.bf16.mxu0 0
  %208 = vmatpush1.bf16.msra.mxu0 0
  %209 = vmatprep.subr.bf16.mxu0 0
  %210 = vmatpush1.bf16.msra.mxu0 0
  %211 = vmatprep.subr.bf16.mxu0 0
  %212 = vmatpush1.bf16.msra.mxu0 0
  %213 = vmatprep.subr.bf16.mxu0 0
  %214 = vmatpush1.bf16.msra.mxu0 0
  %215 = vmatprep.subr.bf16.mxu0 0
  %216 = vmatpush1.bf16.msra.mxu0 0
  %217 = vmatprep.subr.bf16.mxu0 0
  %218 = vmatpush1.bf16.msra.mxu0 %v189
  %219 = vmatprep.subr.bf16.mxu0 0
  %220 = vmatpush2.bf16.msra.mxu0 0
  %221 = vmatprep.subr.bf16.mxu0 0
  %222 = vmatpush2.bf16.msra.mxu0 0
  %223 = vmatprep.subr.bf16.mxu0 0
  %224 = vmatpush2.bf16.msra.mxu0 0
  %225 = vmatprep.subr.bf16.mxu0 0
  %226 = vmatpush2.bf16.msra.mxu0 0
  %227 = vmatprep.subr.bf16.mxu0 0
  %228 = vmatpush2.bf16.msra.mxu0 0
  %229 = vmatprep.subr.bf16.mxu0 0
  %230 = vmatpush2.bf16.msra.mxu0 0
  %231 = vmatprep.subr.bf16.mxu0 0
  %232 = vmatpush2.bf16.msra.mxu0 0
  %233 = vmatprep.subr.bf16.mxu0 0
  %234 = vmatpush2.bf16.msra.mxu0 0
  %235 = vmatprep.mubr.bf16.mxu0 0
  %236 = vmatmul.mubr.bf16.gmra.mxu0 %v192
  %v237 = vpop.f32.mrf.mxu0
  %v238 = vadd.f32 %v135, %v237
  %v239 = vpop.f32.mrf.mxu0
  %v240 = vpop.f32.mrf.mxu0
  %v241 = vadd.f32 %v138, %v240
  %v242 = vpop.f32.mrf.mxu0
  %243 = vmatprep.mubr.bf16.mxu0 0
  %244 = vmatmul.mubr.bf16.gmra.mxu0 %v195
  %v245 = vpop.f32.mrf.mxu0
  %v246 = vadd.f32 %v143, %v245
  %v247 = vpop.f32.mrf.mxu0
  %v248 = vpop.f32.mrf.mxu0
  %v249 = vadd.f32 %v146, %v248
  %v250 = vpop.f32.mrf.mxu0
  %251 = vmatprep.mubr.bf16.mxu0 0
  %252 = vmatmul.mubr.bf16.gmra.mxu0 %v198
  %v253 = vpop.f32.mrf.mxu0
  %v254 = vadd.f32 %v151, %v253
  %v255 = vpop.f32.mrf.mxu0
  %v256 = vpop.f32.mrf.mxu0
  %v257 = vadd.f32 %v154, %v256
  %v258 = vpop.f32.mrf.mxu0
  %259 = vmatprep.mubr.bf16.mxu0 0
  %260 = vmatmul.mubr.bf16.gmra.mxu0 %v201
  %v261 = vpop.f32.mrf.mxu0
  %v262 = vadd.f32 %v159, %v261
  %v263 = vpop.f32.mrf.mxu0
  %v264 = vpop.f32.mrf.mxu0
  %v265 = vadd.f32 %v162, %v264
  %v266 = vpop.f32.mrf.mxu0
  %267 = vdwg.mxu0
  %v269 = vunpack.c.l.b16 %v51
  %v270 = vpack.c.b16 %v175, %v174
  %v271 = vpack.c.b16 %v177, %v176
  %v272 = vpack.c.b16 %v179, %v178
  %v273 = vpack.c.b16 %v269, %v180
  %v276 = vunpack.c.l.b16 %v40
  %v277 = vunpack.c.l.b16 %v41
  %v278 = vpack.c.b16 %v277, %v276
  %v281 = vsel %vm87, %v270, 0
  %v284 = vsel %vm87, %v271, 0
  %v287 = vsel %vm87, %v272, 0
  %v290 = vsel %vm87, %v273, 0
  %292 = vmatprep.subr.bf16.mxu0 0
  %293 = vmatpush1.bf16.msra.mxu0 0
  %294 = vmatprep.subr.bf16.mxu0 0
  %295 = vmatpush1.bf16.msra.mxu0 0
  %296 = vmatprep.subr.bf16.mxu0 0
  %297 = vmatpush1.bf16.msra.mxu0 0
  %298 = vmatprep.subr.bf16.mxu0 0
  %299 = vmatpush1.bf16.msra.mxu0 0
  %300 = vmatprep.subr.bf16.mxu0 0
  %301 = vmatpush1.bf16.msra.mxu0 0
  %302 = vmatprep.subr.bf16.mxu0 0
  %303 = vmatpush1.bf16.msra.mxu0 0
  %304 = vmatprep.subr.bf16.mxu0 0
  %305 = vmatpush1.bf16.msra.mxu0 0
  %306 = vmatprep.subr.bf16.mxu0 0
  %307 = vmatpush1.bf16.msra.mxu0 %v278
  %308 = vmatprep.subr.bf16.mxu0 0
  %309 = vmatpush2.bf16.msra.mxu0 0
  %310 = vmatprep.subr.bf16.mxu0 0
  %311 = vmatpush2.bf16.msra.mxu0 0
  %312 = vmatprep.subr.bf16.mxu0 0
  %313 = vmatpush2.bf16.msra.mxu0 0
  %314 = vmatprep.subr.bf16.mxu0 0
  %315 = vmatpush2.bf16.msra.mxu0 0
  %316 = vmatprep.subr.bf16.mxu0 0
  %317 = vmatpush2.bf16.msra.mxu0 0
  %318 = vmatprep.subr.bf16.mxu0 0
  %319 = vmatpush2.bf16.msra.mxu0 0
  %320 = vmatprep.subr.bf16.mxu0 0
  %321 = vmatpush2.bf16.msra.mxu0 0
  %322 = vmatprep.subr.bf16.mxu0 0
  %323 = vmatpush2.bf16.msra.mxu0 0
  %324 = vmatprep.mubr.bf16.mxu0 0
  %325 = vmatmul.mubr.bf16.gmra.mxu0 %v281
  %v326 = vpop.f32.mrf.mxu0
  %v327 = vadd.f32 0.0, %v326
  %v328 = vpop.f32.mrf.mxu0
  %v329 = vpop.f32.mrf.mxu0
  %v330 = vadd.f32 0.0, %v329
  %v331 = vpop.f32.mrf.mxu0
  %332 = vmatprep.mubr.bf16.mxu0 0
  %333 = vmatmul.mubr.bf16.gmra.mxu0 %v284
  %v334 = vpop.f32.mrf.mxu0
  %v335 = vadd.f32 0.0, %v334
  %v336 = vpop.f32.mrf.mxu0
  %v337 = vpop.f32.mrf.mxu0
  %v338 = vadd.f32 0.0, %v337
  %v339 = vpop.f32.mrf.mxu0
  %340 = vmatprep.mubr.bf16.mxu0 0
  %341 = vmatmul.mubr.bf16.gmra.mxu0 %v287
  %v342 = vpop.f32.mrf.mxu0
  %v343 = vadd.f32 0.0, %v342
  %v344 = vpop.f32.mrf.mxu0
  %v345 = vpop.f32.mrf.mxu0
  %v346 = vadd.f32 0.0, %v345
  %v347 = vpop.f32.mrf.mxu0
  %348 = vmatprep.mubr.bf16.mxu0 0
  %349 = vmatmul.mubr.bf16.gmra.mxu0 %v290
  %v350 = vpop.f32.mrf.mxu0
  %v351 = vadd.f32 0.0, %v350
  %v352 = vpop.f32.mrf.mxu0
  %v353 = vpop.f32.mrf.mxu0
  %v354 = vadd.f32 0.0, %v353
  %v355 = vpop.f32.mrf.mxu0
  %356 = vdwg.mxu0
  %v357 = vadd.f32 %v238, %v327
  %v358 = vadd.f32 %v241, %v330
  %v359 = vadd.f32 %v246, %v335
  %v360 = vadd.f32 %v249, %v338
  %v361 = vadd.f32 %v254, %v343
  %v362 = vadd.f32 %v257, %v346
  %v363 = vadd.f32 %v262, %v351
  %v364 = vadd.f32 %v265, %v354
  %v366 = vlaneseq
  %v367 = vshrl.u32 %v366, 7
  %v368 = vsub.s32 0, %v367
  %v369 = vrot.slane %v42, %v368
  %v371 = vadd.f32 %v357, %v369
  %v372 = vadd.f32 %v358, %v369
  %v373 = vadd.f32 %v359, %v369
  %v374 = vadd.f32 %v360, %v369
  %v375 = vadd.f32 %v361, %v369
  %v376 = vadd.f32 %v362, %v369
  %v377 = vadd.f32 %v363, %v369
  %v378 = vadd.f32 %v364, %v369
  %379 = vmatprep.subr.bf16.mxu0 0
  %380 = vmatpush1.bf16.msra.mxu0 0
  %381 = vmatprep.subr.bf16.mxu0 0
  %382 = vmatpush1.bf16.msra.mxu0 0
  %383 = vmatprep.subr.bf16.mxu0 0
  %384 = vmatpush1.bf16.msra.mxu0 0
  %385 = vmatprep.subr.bf16.mxu0 0
  %386 = vmatpush1.bf16.msra.mxu0 0
  %387 = vmatprep.subr.bf16.mxu0 0
  %388 = vmatpush1.bf16.msra.mxu0 0
  %389 = vmatprep.subr.bf16.mxu0 0
  %390 = vmatpush1.bf16.msra.mxu0 0
  %391 = vmatprep.subr.bf16.mxu0 0
  %392 = vmatpush1.bf16.msra.mxu0 0
  %393 = vmatprep.subr.bf16.mxu0 0
  %394 = vmatpush1.bf16.msra.mxu0 %v85
  %395 = vmatprep.subr.bf16.mxu0 0
  %396 = vmatpush2.bf16.msra.mxu0 0
  %397 = vmatprep.subr.bf16.mxu0 0
  %398 = vmatpush2.bf16.msra.mxu0 0
  %399 = vmatprep.subr.bf16.mxu0 0
  %400 = vmatpush2.bf16.msra.mxu0 0
  %401 = vmatprep.subr.bf16.mxu0 0
  %402 = vmatpush2.bf16.msra.mxu0 0
  %403 = vmatprep.subr.bf16.mxu0 0
  %404 = vmatpush2.bf16.msra.mxu0 0
  %405 = vmatprep.subr.bf16.mxu0 0
  %406 = vmatpush2.bf16.msra.mxu0 0
  %407 = vmatprep.subr.bf16.mxu0 0
  %408 = vmatpush2.bf16.msra.mxu0 0
  %409 = vmatprep.subr.bf16.mxu0 0
  %410 = vmatpush2.bf16.msra.mxu0 0
  %411 = vmatprep.mubr.bf16.mxu0 0
  %412 = vmatmul.mubr.bf16.gmra.mxu0 %v281
  %v413 = vpop.f32.mrf.mxu0
  %v414 = vadd.f32 0.0, %v413
  %v415 = vpop.f32.mrf.mxu0
  %v416 = vpop.f32.mrf.mxu0
  %v417 = vadd.f32 0.0, %v416
  %v418 = vpop.f32.mrf.mxu0
  %419 = vmatprep.mubr.bf16.mxu0 0
  %420 = vmatmul.mubr.bf16.gmra.mxu0 %v284
  %v421 = vpop.f32.mrf.mxu0
  %v422 = vadd.f32 0.0, %v421
  %v423 = vpop.f32.mrf.mxu0
  %v424 = vpop.f32.mrf.mxu0
  %v425 = vadd.f32 0.0, %v424
  %v426 = vpop.f32.mrf.mxu0
  %427 = vmatprep.mubr.bf16.mxu0 0
  %428 = vmatmul.mubr.bf16.gmra.mxu0 %v287
  %v429 = vpop.f32.mrf.mxu0
  %v430 = vadd.f32 0.0, %v429
  %v431 = vpop.f32.mrf.mxu0
  %v432 = vpop.f32.mrf.mxu0
  %v433 = vadd.f32 0.0, %v432
  %v434 = vpop.f32.mrf.mxu0
  %435 = vmatprep.mubr.bf16.mxu0 0
  %436 = vmatmul.mubr.bf16.gmra.mxu0 %v290
  %v437 = vpop.f32.mrf.mxu0
  %v438 = vadd.f32 0.0, %v437
  %v439 = vpop.f32.mrf.mxu0
  %v440 = vpop.f32.mrf.mxu0
  %v441 = vadd.f32 0.0, %v440
  %v442 = vpop.f32.mrf.mxu0
  %443 = vdwg.mxu0
  %444 = vmatprep.subr.bf16.mxu0 0
  %445 = vmatpush1.bf16.msra.mxu0 0
  %446 = vmatprep.subr.bf16.mxu0 0
  %447 = vmatpush1.bf16.msra.mxu0 0
  %448 = vmatprep.subr.bf16.mxu0 0
  %449 = vmatpush1.bf16.msra.mxu0 0
  %450 = vmatprep.subr.bf16.mxu0 0
  %451 = vmatpush1.bf16.msra.mxu0 0
  %452 = vmatprep.subr.bf16.mxu0 0
  %453 = vmatpush1.bf16.msra.mxu0 0
  %454 = vmatprep.subr.bf16.mxu0 0
  %455 = vmatpush1.bf16.msra.mxu0 0
  %456 = vmatprep.subr.bf16.mxu0 0
  %457 = vmatpush1.bf16.msra.mxu0 0
  %458 = vmatprep.subr.bf16.mxu0 0
  %459 = vmatpush1.bf16.msra.mxu0 %v189
  %460 = vmatprep.subr.bf16.mxu0 0
  %461 = vmatpush2.bf16.msra.mxu0 0
  %462 = vmatprep.subr.bf16.mxu0 0
  %463 = vmatpush2.bf16.msra.mxu0 0
  %464 = vmatprep.subr.bf16.mxu0 0
  %465 = vmatpush2.bf16.msra.mxu0 0
  %466 = vmatprep.subr.bf16.mxu0 0
  %467 = vmatpush2.bf16.msra.mxu0 0
  %468 = vmatprep.subr.bf16.mxu0 0
  %469 = vmatpush2.bf16.msra.mxu0 0
  %470 = vmatprep.subr.bf16.mxu0 0
  %471 = vmatpush2.bf16.msra.mxu0 0
  %472 = vmatprep.subr.bf16.mxu0 0
  %473 = vmatpush2.bf16.msra.mxu0 0
  %474 = vmatprep.subr.bf16.mxu0 0
  %475 = vmatpush2.bf16.msra.mxu0 0
  %476 = vmatprep.mubr.bf16.mxu0 0
  %477 = vmatmul.mubr.bf16.gmra.mxu0 %v89
  %v478 = vpop.f32.mrf.mxu0
  %v479 = vadd.f32 %v414, %v478
  %v480 = vpop.f32.mrf.mxu0
  %v481 = vpop.f32.mrf.mxu0
  %v482 = vadd.f32 %v417, %v481
  %v483 = vpop.f32.mrf.mxu0
  %484 = vmatprep.mubr.bf16.mxu0 0
  %485 = vmatmul.mubr.bf16.gmra.mxu0 %v92
  %v486 = vpop.f32.mrf.mxu0
  %v487 = vadd.f32 %v422, %v486
  %v488 = vpop.f32.mrf.mxu0
  %v489 = vpop.f32.mrf.mxu0
  %v490 = vadd.f32 %v425, %v489
  %v491 = vpop.f32.mrf.mxu0
  %492 = vmatprep.mubr.bf16.mxu0 0
  %493 = vmatmul.mubr.bf16.gmra.mxu0 %v95
  %v494 = vpop.f32.mrf.mxu0
  %v495 = vadd.f32 %v430, %v494
  %v496 = vpop.f32.mrf.mxu0
  %v497 = vpop.f32.mrf.mxu0
  %v498 = vadd.f32 %v433, %v497
  %v499 = vpop.f32.mrf.mxu0
  %500 = vmatprep.mubr.bf16.mxu0 0
  %501 = vmatmul.mubr.bf16.gmra.mxu0 %v98
  %v502 = vpop.f32.mrf.mxu0
  %v503 = vadd.f32 %v438, %v502
  %v504 = vpop.f32.mrf.mxu0
  %v505 = vpop.f32.mrf.mxu0
  %v506 = vadd.f32 %v441, %v505
  %v507 = vpop.f32.mrf.mxu0
  %508 = vdwg.mxu0
  %v510 = vunpack.c.l.b16 %v60
  %v511 = vpack.c.b16 %v71, %v70
  %v512 = vpack.c.b16 %v73, %v72
  %v513 = vpack.c.b16 %v75, %v74
  %v514 = vpack.c.b16 %v510, %v76
  %v516 = vsel %vm87, %v511, 0
  %v519 = vsel %vm87, %v512, 0
  %v522 = vsel %vm87, %v513, 0
  %v525 = vsel %vm87, %v514, 0
  %527 = vmatprep.subr.bf16.mxu0 0
  %528 = vmatpush1.bf16.msra.mxu0 0
  %529 = vmatprep.subr.bf16.mxu0 0
  %530 = vmatpush1.bf16.msra.mxu0 0
  %531 = vmatprep.subr.bf16.mxu0 0
  %532 = vmatpush1.bf16.msra.mxu0 0
  %533 = vmatprep.subr.bf16.mxu0 0
  %534 = vmatpush1.bf16.msra.mxu0 0
  %535 = vmatprep.subr.bf16.mxu0 0
  %536 = vmatpush1.bf16.msra.mxu0 0
  %537 = vmatprep.subr.bf16.mxu0 0
  %538 = vmatpush1.bf16.msra.mxu0 0
  %539 = vmatprep.subr.bf16.mxu0 0
  %540 = vmatpush1.bf16.msra.mxu0 0
  %541 = vmatprep.subr.bf16.mxu0 0
  %542 = vmatpush1.bf16.msra.mxu0 %v278
  %543 = vmatprep.subr.bf16.mxu0 0
  %544 = vmatpush2.bf16.msra.mxu0 0
  %545 = vmatprep.subr.bf16.mxu0 0
  %546 = vmatpush2.bf16.msra.mxu0 0
  %547 = vmatprep.subr.bf16.mxu0 0
  %548 = vmatpush2.bf16.msra.mxu0 0
  %549 = vmatprep.subr.bf16.mxu0 0
  %550 = vmatpush2.bf16.msra.mxu0 0
  %551 = vmatprep.subr.bf16.mxu0 0
  %552 = vmatpush2.bf16.msra.mxu0 0
  %553 = vmatprep.subr.bf16.mxu0 0
  %554 = vmatpush2.bf16.msra.mxu0 0
  %555 = vmatprep.subr.bf16.mxu0 0
  %556 = vmatpush2.bf16.msra.mxu0 0
  %557 = vmatprep.subr.bf16.mxu0 0
  %558 = vmatpush2.bf16.msra.mxu0 0
  %559 = vmatprep.mubr.bf16.mxu0 0
  %560 = vmatmul.mubr.bf16.gmra.mxu0 %v516
  %v561 = vpop.f32.mrf.mxu0
  %v562 = vadd.f32 0.0, %v561
  %v563 = vpop.f32.mrf.mxu0
  %v564 = vpop.f32.mrf.mxu0
  %v565 = vadd.f32 0.0, %v564
  %v566 = vpop.f32.mrf.mxu0
  %567 = vmatprep.mubr.bf16.mxu0 0
  %568 = vmatmul.mubr.bf16.gmra.mxu0 %v519
  %v569 = vpop.f32.mrf.mxu0
  %v570 = vadd.f32 0.0, %v569
  %v571 = vpop.f32.mrf.mxu0
  %v572 = vpop.f32.mrf.mxu0
  %v573 = vadd.f32 0.0, %v572
  %v574 = vpop.f32.mrf.mxu0
  %575 = vmatprep.mubr.bf16.mxu0 0
  %576 = vmatmul.mubr.bf16.gmra.mxu0 %v522
  %v577 = vpop.f32.mrf.mxu0
  %v578 = vadd.f32 0.0, %v577
  %v579 = vpop.f32.mrf.mxu0
  %v580 = vpop.f32.mrf.mxu0
  %v581 = vadd.f32 0.0, %v580
  %v582 = vpop.f32.mrf.mxu0
  %583 = vmatprep.mubr.bf16.mxu0 0
  %584 = vmatmul.mubr.bf16.gmra.mxu0 %v525
  %v585 = vpop.f32.mrf.mxu0
  %v586 = vadd.f32 0.0, %v585
  %v587 = vpop.f32.mrf.mxu0
  %v588 = vpop.f32.mrf.mxu0
  %v589 = vadd.f32 0.0, %v588
  %v590 = vpop.f32.mrf.mxu0
  %591 = vdwg.mxu0
  %v592 = vadd.f32 %v479, %v562
  %v593 = vadd.f32 %v482, %v565
  %v594 = vadd.f32 %v487, %v570
  %v595 = vadd.f32 %v490, %v573
  %v596 = vadd.f32 %v495, %v578
  %v597 = vadd.f32 %v498, %v581
  %v598 = vadd.f32 %v503, %v586
  %v599 = vadd.f32 %v506, %v589
  %v600 = vadd.f32 %v592, %v369
  %v601 = vadd.f32 %v593, %v369
  %v602 = vadd.f32 %v594, %v369
  %v603 = vadd.f32 %v595, %v369
  %v604 = vadd.f32 %v596, %v369
  %v605 = vadd.f32 %v597, %v369
  %v606 = vadd.f32 %v598, %v369
  %v607 = vadd.f32 %v599, %v369
  %v608 = vmax.f32 %v371, %v600
  %v609 = vmax.f32 %v372, %v601
  %v610 = vmax.f32 %v373, %v602
  %v611 = vmax.f32 %v374, %v603
  %v612 = vmax.f32 %v375, %v604
  %v613 = vmax.f32 %v376, %v605
  %v614 = vmax.f32 %v377, %v606
  %v615 = vmax.f32 %v378, %v607
  %v616 = vmax.f32 %v608, 0.0
  %v617 = vmax.f32 %v609, 0.0
  %v618 = vmax.f32 %v610, 0.0
  %v619 = vmax.f32 %v611, 0.0
  %v620 = vmax.f32 %v612, 0.0
  %v621 = vmax.f32 %v613, 0.0
  %v622 = vmax.f32 %v614, 0.0
  %v623 = vmax.f32 %v615, 0.0
  %v624 = vpack.c.bf16 %v617, %v616
  %v625 = vpack.c.bf16 %v619, %v618
  %v626 = vpack.c.bf16 %v621, %v620
  %v627 = vpack.c.bf16 %v623, %v622
  %v632 = vunpack.c.l.b16 %v624
  %v633 = vunpack.c.h.b16 %v624
  %v634 = vunpack.c.l.b16 %v625
  %v635 = vunpack.c.h.b16 %v625
  %v636 = vunpack.c.l.b16 %v626
  %v637 = vunpack.c.h.b16 %v626
  %v638 = vunpack.c.l.b16 %v627
  %v639 = vunpack.c.h.b16 %v627
  %v640 = vpack.c.b16 %v632, %v632
  %v641 = vpack.c.b16 %v633, %v633
  %v642 = vpack.c.b16 %v634, %v634
  %v643 = vpack.c.b16 %v635, %v635
  %v644 = vpack.c.b16 %v636, %v636
  %v645 = vpack.c.b16 %v637, %v637
  %v646 = vpack.c.b16 %v638, %v638
  %v647 = vpack.c.b16 %v639, %v639
  %vm656 = vcmask 125952
  %657 = vst.msk [vmem:[#allocation2] sm:$0xf] %vm656, %v640
  %658 = vst.msk [vmem:[#allocation2 + $0x4] sm:$0xf] %vm656, %v641
  %659 = vst.msk [vmem:[#allocation2 + $0x8] sm:$0xf] %vm656, %v642
  %660 = vst.msk [vmem:[#allocation2 + $0xc] sm:$0xf] %vm656, %v643
  %661 = vst.msk [vmem:[#allocation2 + $0x10] sm:$0xf] %vm656, %v644
  %662 = vst.msk [vmem:[#allocation2 + $0x14] sm:$0xf] %vm656, %v645
  %663 = vst.msk [vmem:[#allocation2 + $0x18] sm:$0xf] %vm656, %v646
  %664 = vst.msk [vmem:[#allocation2 + $0x1c] sm:$0xf] %vm656, %v647
  %v665 = vld [vmem:[#allocation2] sm:$0xf]
  %v666 = vld [vmem:[#allocation2 + $0x4] sm:$0xf]
  %v667 = vld [vmem:[#allocation2 + $0x8] sm:$0xf]
  %v668 = vld [vmem:[#allocation2 + $0xc] sm:$0xf]
  %v669 = vld [vmem:[#allocation2 + $0x10] sm:$0xf]
  %v670 = vld [vmem:[#allocation2 + $0x14] sm:$0xf]
  %v671 = vld [vmem:[#allocation2 + $0x18] sm:$0xf]
  %v672 = vld [vmem:[#allocation2 + $0x1c] sm:$0xf]
  %v673 = vld [vmem:[%s3] sm:$0xf]
  %v674 = vld [vmem:[%s3 + $0x4] sm:$0xf]
  %v675 = vld [vmem:[%s4] sm:$0x1]
  %v677 = vlaneseq
  %v678 = vshrl.u32 %v677, 7
  %v679 = vsub.s32 0, %v678
  %v680 = vrot.slane %v675, %v679
  %v690 = vunpack.c.l.b16 %v665
  %v691 = vunpack.c.l.b16 %v666
  %v692 = vunpack.c.l.b16 %v667
  %v693 = vunpack.c.l.b16 %v668
  %v694 = vunpack.c.l.b16 %v669
  %v695 = vunpack.c.l.b16 %v670
  %v696 = vunpack.c.l.b16 %v671
  %v697 = vunpack.c.l.b16 %v672
  %v698 = vpack.c.b16 %v691, %v690
  %v699 = vpack.c.b16 %v693, %v692
  %v700 = vpack.c.b16 %v695, %v694
  %v701 = vpack.c.b16 %v697, %v696
  %v704 = vunpack.c.l.b16 %v673
  %v705 = vunpack.c.l.b16 %v674
  %v706 = vpack.c.b16 %v705, %v704
  %v709 = vsel %vm87, %v698, 0
  %v712 = vsel %vm87, %v699, 0
  %v715 = vsel %vm87, %v700, 0
  %v718 = vsel %vm87, %v701, 0
  %720 = vmatprep.subr.bf16.mxu0 0
  %721 = vmatpush1.bf16.msra.mxu0 0
  %722 = vmatprep.subr.bf16.mxu0 0
  %723 = vmatpush1.bf16.msra.mxu0 0
  %724 = vmatprep.subr.bf16.mxu0 0
  %725 = vmatpush1.bf16.msra.mxu0 0
  %726 = vmatprep.subr.bf16.mxu0 0
  %727 = vmatpush1.bf16.msra.mxu0 0
  %728 = vmatprep.subr.bf16.mxu0 0
  %729 = vmatpush1.bf16.msra.mxu0 0
  %730 = vmatprep.subr.bf16.mxu0 0
  %731 = vmatpush1.bf16.msra.mxu0 0
  %732 = vmatprep.subr.bf16.mxu0 0
  %733 = vmatpush1.bf16.msra.mxu0 0
  %734 = vmatprep.subr.bf16.mxu0 0
  %735 = vmatpush1.bf16.msra.mxu0 %v706
  %736 = vmatprep.subr.bf16.mxu0 0
  %737 = vmatpush2.bf16.msra.mxu0 0
  %738 = vmatprep.subr.bf16.mxu0 0
  %739 = vmatpush2.bf16.msra.mxu0 0
  %740 = vmatprep.subr.bf16.mxu0 0
  %741 = vmatpush2.bf16.msra.mxu0 0
  %742 = vmatprep.subr.bf16.mxu0 0
  %743 = vmatpush2.bf16.msra.mxu0 0
  %744 = vmatprep.subr.bf16.mxu0 0
  %745 = vmatpush2.bf16.msra.mxu0 0
  %746 = vmatprep.subr.bf16.mxu0 0
  %747 = vmatpush2.bf16.msra.mxu0 0
  %748 = vmatprep.subr.bf16.mxu0 0
  %749 = vmatpush2.bf16.msra.mxu0 0
  %750 = vmatprep.subr.bf16.mxu0 0
  %751 = vmatpush2.bf16.msra.mxu0 0
  %752 = vmatprep.mubr.bf16.mxu0 0
  %753 = vmatmul.mubr.bf16.gmra.mxu0 %v709
  %v754 = vpop.f32.mrf.mxu0
  %v755 = vadd.f32 %v680, %v754
  %v756 = vpop.f32.mrf.mxu0
  %v757 = vpop.f32.mrf.mxu0
  %v758 = vadd.f32 %v680, %v757
  %v759 = vpop.f32.mrf.mxu0
  %760 = vmatprep.mubr.bf16.mxu0 0
  %761 = vmatmul.mubr.bf16.gmra.mxu0 %v712
  %v762 = vpop.f32.mrf.mxu0
  %v763 = vadd.f32 %v680, %v762
  %v764 = vpop.f32.mrf.mxu0
  %v765 = vpop.f32.mrf.mxu0
  %v766 = vadd.f32 %v680, %v765
  %v767 = vpop.f32.mrf.mxu0
  %768 = vmatprep.mubr.bf16.mxu0 0
  %769 = vmatmul.mubr.bf16.gmra.mxu0 %v715
  %v770 = vpop.f32.mrf.mxu0
  %v771 = vadd.f32 %v680, %v770
  %v772 = vpop.f32.mrf.mxu0
  %v773 = vpop.f32.mrf.mxu0
  %v774 = vadd.f32 %v680, %v773
  %v775 = vpop.f32.mrf.mxu0
  %776 = vmatprep.mubr.bf16.mxu0 0
  %777 = vmatmul.mubr.bf16.gmra.mxu0 %v718
  %v778 = vpop.f32.mrf.mxu0
  %v779 = vadd.f32 %v680, %v778
  %v780 = vpop.f32.mrf.mxu0
  %v781 = vpop.f32.mrf.mxu0
  %v782 = vadd.f32 %v680, %v781
  %v783 = vpop.f32.mrf.mxu0
  %784 = vdwg.mxu0
  %785 = vst [vmem:[#allocation3] sm:$0xff] %v755
  %786 = vst [vmem:[#allocation3 + $0x8] sm:$0xff] %v758
  %787 = vst [vmem:[#allocation3 + $0x10] sm:$0xff] %v763
  %788 = vst [vmem:[#allocation3 + $0x18] sm:$0xff] %v766
  %789 = vst [vmem:[#allocation3 + $0x20] sm:$0xff] %v771
  %790 = vst [vmem:[#allocation3 + $0x28] sm:$0xff] %v774
  %791 = vst [vmem:[#allocation3 + $0x30] sm:$0xff] %v779
  %792 = vst [vmem:[#allocation3 + $0x38] sm:$0xff] %v782
  %v793 = vld [vmem:[%s5] sm:$0xff]
  %v794 = vld [vmem:[%s5 + $0x8] sm:$0xff]
  %v795 = vld [vmem:[%s5 + $0x10] sm:$0xff]
  %v796 = vld [vmem:[%s5 + $0x18] sm:$0xff]
  %v797 = vld [vmem:[#allocation3] sm:$0xff]
  %vm798 = vcmask 261120
  %v800 = vsel %vm798, 0.0, 0
  %802 = vmatprep.subr.mxu0 0.0
  %803 = vmatpush1.msra.mxu0 0.0
  %804 = vmatprep.subr.mxu0 0.0
  %805 = vmatpush1.msra.mxu0 0.0
  %806 = vmatprep.subr.mxu0 0.0
  %807 = vmatpush1.msra.mxu0 0.0
  %808 = vmatprep.subr.mxu0 0.0
  %809 = vmatpush1.msra.mxu0 0.0
  %810 = vmatprep.subr.mxu0 0.0
  %811 = vmatpush1.msra.mxu0 0.0
  %812 = vmatprep.subr.mxu0 0.0
  %813 = vmatpush1.msra.mxu0 0.0
  %814 = vmatprep.subr.mxu0 0.0
  %815 = vmatpush1.msra.mxu0 0.0
  %816 = vmatprep.subr.mxu0 0.0
  %817 = vmatpush1.msra.mxu0 0.0
  %818 = vmatprep.subr.mxu0 0.0
  %819 = vmatpush1.msra.mxu0 0.0
  %820 = vmatprep.subr.mxu0 0.0
  %821 = vmatpush1.msra.mxu0 0.0
  %822 = vmatprep.subr.mxu0 0.0
  %823 = vmatpush1.msra.mxu0 0.0
  %824 = vmatprep.subr.mxu0 0.0
  %825 = vmatpush1.msra.mxu0 0.0
  %826 = vmatprep.subr.mxu0 0.0
  %827 = vmatpush1.msra.mxu0 %v796
  %828 = vmatprep.subr.mxu0 0.0
  %829 = vmatpush1.msra.mxu0 %v795
  %830 = vmatprep.subr.mxu0 0.0
  %831 = vmatpush1.msra.mxu0 %v794
  %832 = vmatprep.subr.mxu0 0.0
  %833 = vmatpush1.msra.mxu0 %v793
  %834 = vmatprep.subr.mxu0 0.0
  %835 = vmatpush2.msra.mxu0 0.0
  %836 = vmatprep.subr.mxu0 0.0
  %837 = vmatpush2.msra.mxu0 0.0
  %838 = vmatprep.subr.mxu0 0.0
  %839 = vmatpush2.msra.mxu0 0.0
  %840 = vmatprep.subr.mxu0 0.0
  %841 = vmatpush2.msra.mxu0 0.0
  %842 = vmatprep.subr.mxu0 0.0
  %843 = vmatpush2.msra.mxu0 0.0
  %844 = vmatprep.subr.mxu0 0.0
  %845 = vmatpush2.msra.mxu0 0.0
  %846 = vmatprep.subr.mxu0 0.0
  %847 = vmatpush2.msra.mxu0 0.0
  %848 = vmatprep.subr.mxu0 0.0
  %849 = vmatpush2.msra.mxu0 0.0
  %850 = vmatprep.subr.mxu0 0.0
  %851 = vmatpush2.msra.mxu0 0.0
  %852 = vmatprep.subr.mxu0 0.0
  %853 = vmatpush2.msra.mxu0 0.0
  %854 = vmatprep.subr.mxu0 0.0
  %855 = vmatpush2.msra.mxu0 0.0
  %856 = vmatprep.subr.mxu0 0.0
  %857 = vmatpush2.msra.mxu0 0.0
  %858 = vmatprep.subr.mxu0 0.0
  %859 = vmatpush2.msra.mxu0 0.0
  %860 = vmatprep.subr.mxu0 0.0
  %861 = vmatpush2.msra.mxu0 0.0
  %862 = vmatprep.subr.mxu0 0.0
  %863 = vmatpush2.msra.mxu0 0.0
  %864 = vmatprep.subr.mxu0 0.0
  %865 = vmatpush2.msra.mxu0 0.0
  %866 = vmatprep.mubr.f32.mxu0 0.0
  %867 = vmatmul.mubr.f32.gmra.mxu0 %v800
  %v868 = vpop.f32.mrf.mxu0
  %v869 = vadd.f32 0.0, %v868
  %v870 = vpop.f32.mrf.mxu0
  %871 = vdwg.mxu0
  %v872 = vadd.f32 %v797, %v869
  %v873 = vmul.f32 %v872, 0.5
  %v874 = vtanh.pop %v873
  %v875 = vmul.f32 %v874, 0.5
  %v876 = vadd.f32 %v875, 0.5
  %v877 = vmul.f32 %v876, 2.0
  %v878 = vsub.f32 %v877, 1.0
  %v879 = vmul.f32 %v876, 0.0
  %881 = vrot.lane.b32.xlu0 %v878, 64
  %v882 = vpop.permute.xlu0 %881
  %v884 = vmul.f32 %v876, %v882
  %886 = vrot.lane.b32.xlu0 %v884, 32
  %v887 = vpop.permute.xlu0 %886
  %v889 = vadd.f32 %v879, %v887
  %v890 = vtanh.pop %v889
  %892 = vrot.lane.b32.xlu0 %v890, 64
  %v893 = vpop.permute.xlu0 %892
  %v895 = vmul.f32 %v876, %v893
  %v896 = vld [vmem:[#allocation3 + $0x8] sm:$0xff]
  %898 = vrot.lane.b32.xlu0 %v895, 32
  %v899 = vpop.permute.xlu0 %898
  %v900 = vsel %vm798, %v899, 0
  %902 = vmatprep.subr.mxu0 0.0
  %903 = vmatpush1.msra.mxu0 0.0
  %904 = vmatprep.subr.mxu0 0.0
  %905 = vmatpush1.msra.mxu0 0.0
  %906 = vmatprep.subr.mxu0 0.0
  %907 = vmatpush1.msra.mxu0 0.0
  %908 = vmatprep.subr.mxu0 0.0
  %909 = vmatpush1.msra.mxu0 0.0
  %910 = vmatprep.subr.mxu0 0.0
  %911 = vmatpush1.msra.mxu0 0.0
  %912 = vmatprep.subr.mxu0 0.0
  %913 = vmatpush1.msra.mxu0 0.0
  %914 = vmatprep.subr.mxu0 0.0
  %915 = vmatpush1.msra.mxu0 0.0
  %916 = vmatprep.subr.mxu0 0.0
  %917 = vmatpush1.msra.mxu0 0.0
  %918 = vmatprep.subr.mxu0 0.0
  %919 = vmatpush1.msra.mxu0 0.0
  %920 = vmatprep.subr.mxu0 0.0
  %921 = vmatpush1.msra.mxu0 0.0
  %922 = vmatprep.subr.mxu0 0.0
  %923 = vmatpush1.msra.mxu0 0.0
  %924 = vmatprep.subr.mxu0 0.0
  %925 = vmatpush1.msra.mxu0 0.0
  %926 = vmatprep.subr.mxu0 0.0
  %927 = vmatpush1.msra.mxu0 %v796
  %928 = vmatprep.subr.mxu0 0.0
  %929 = vmatpush1.msra.mxu0 %v795
  %930 = vmatprep.subr.mxu0 0.0
  %931 = vmatpush1.msra.mxu0 %v794
  %932 = vmatprep.subr.mxu0 0.0
  %933 = vmatpush1.msra.mxu0 %v793
  %934 = vmatprep.subr.mxu0 0.0
  %935 = vmatpush2.msra.mxu0 0.0
  %936 = vmatprep.subr.mxu0 0.0
  %937 = vmatpush2.msra.mxu0 0.0
  %938 = vmatprep.subr.mxu0 0.0
  %939 = vmatpush2.msra.mxu0 0.0
  %940 = vmatprep.subr.mxu0 0.0
  %941 = vmatpush2.msra.mxu0 0.0
  %942 = vmatprep.subr.mxu0 0.0
  %943 = vmatpush2.msra.mxu0 0.0
  %944 = vmatprep.subr.mxu0 0.0
  %945 = vmatpush2.msra.mxu0 0.0
  %946 = vmatprep.subr.mxu0 0.0
  %947 = vmatpush2.msra.mxu0 0.0
  %948 = vmatprep.subr.mxu0 0.0
  %949 = vmatpush2.msra.mxu0 0.0
  %950 = vmatprep.subr.mxu0 0.0
  %951 = vmatpush2.msra.mxu0 0.0
  %952 = vmatprep.subr.mxu0 0.0
  %953 = vmatpush2.msra.mxu0 0.0
  %954 = vmatprep.subr.mxu0 0.0
  %955 = vmatpush2.msra.mxu0 0.0
  %956 = vmatprep.subr.mxu0 0.0
  %957 = vmatpush2.msra.mxu0 0.0
  %958 = vmatprep.subr.mxu0 0.0
  %959 = vmatpush2.msra.mxu0 0.0
  %960 = vmatprep.subr.mxu0 0.0
  %961 = vmatpush2.msra.mxu0 0.0
  %962 = vmatprep.subr.mxu0 0.0
  %963 = vmatpush2.msra.mxu0 0.0
  %964 = vmatprep.subr.mxu0 0.0
  %965 = vmatpush2.msra.mxu0 0.0
  %966 = vmatprep.mubr.f32.mxu0 0.0
  %967 = vmatmul.mubr.f32.gmra.mxu0 %v900
  %v968 = vpop.f32.mrf.mxu0
  %v969 = vadd.f32 0.0, %v968
  %v970 = vpop.f32.mrf.mxu0
  %971 = vdwg.mxu0
  %v972 = vadd.f32 %v896, %v969
  %v973 = vmul.f32 %v972, 0.5
  %v974 = vtanh.pop %v973
  %v975 = vmul.f32 %v974, 0.5
  %v976 = vadd.f32 %v975, 0.5
  %v977 = vmul.f32 %v976, 2.0
  %v978 = vsub.f32 %v977, 1.0
  %v979 = vmul.f32 %v976, %v889
  %981 = vrot.lane.b32.xlu0 %v978, 64
  %v982 = vpop.permute.xlu0 %981
  %v984 = vmul.f32 %v976, %v982
  %986 = vrot.lane.b32.xlu0 %v984, 32
  %v987 = vpop.permute.xlu0 %986
  %v989 = vadd.f32 %v979, %v987
  %v990 = vtanh.pop %v989
  %992 = vrot.lane.b32.xlu0 %v990, 64
  %v993 = vpop.permute.xlu0 %992
  %v995 = vmul.f32 %v976, %v993
  %v996 = vld [vmem:[#allocation3 + $0x10] sm:$0xff]
  %998 = vrot.lane.b32.xlu0 %v995, 32
  %v999 = vpop.permute.xlu0 %998
  %v1000 = vsel %vm798, %v999, 0
  %1002 = vmatprep.subr.mxu0 0.0
  %1003 = vmatpush1.msra.mxu0 0.0
  %1004 = vmatprep.subr.mxu0 0.0
  %1005 = vmatpush1.msra.mxu0 0.0
  %1006 = vmatprep.subr.mxu0 0.0
  %1007 = vmatpush1.msra.mxu0 0.0
  %1008 = vmatprep.subr.mxu0 0.0
  %1009 = vmatpush1.msra.mxu0 0.0
  %1010 = vmatprep.subr.mxu0 0.0
  %1011 = vmatpush1.msra.mxu0 0.0
  %1012 = vmatprep.subr.mxu0 0.0
  %1013 = vmatpush1.msra.mxu0 0.0
  %1014 = vmatprep.subr.mxu0 0.0
  %1015 = vmatpush1.msra.mxu0 0.0
  %1016 = vmatprep.subr.mxu0 0.0
  %1017 = vmatpush1.msra.mxu0 0.0
  %1018 = vmatprep.subr.mxu0 0.0
  %1019 = vmatpush1.msra.mxu0 0.0
  %1020 = vmatprep.subr.mxu0 0.0
  %1021 = vmatpush1.msra.mxu0 0.0
  %1022 = vmatprep.subr.mxu0 0.0
  %1023 = vmatpush1.msra.mxu0 0.0
  %1024 = vmatprep.subr.mxu0 0.0
  %1025 = vmatpush1.msra.mxu0 0.0
  %1026 = vmatprep.subr.mxu0 0.0
  %1027 = vmatpush1.msra.mxu0 %v796
  %1028 = vmatprep.subr.mxu0 0.0
  %1029 = vmatpush1.msra.mxu0 %v795
  %1030 = vmatprep.subr.mxu0 0.0
  %1031 = vmatpush1.msra.mxu0 %v794
  %1032 = vmatprep.subr.mxu0 0.0
  %1033 = vmatpush1.msra.mxu0 %v793
  %1034 = vmatprep.subr.mxu0 0.0
  %1035 = vmatpush2.msra.mxu0 0.0
  %1036 = vmatprep.subr.mxu0 0.0
  %1037 = vmatpush2.msra.mxu0 0.0
  %1038 = vmatprep.subr.mxu0 0.0
  %1039 = vmatpush2.msra.mxu0 0.0
  %1040 = vmatprep.subr.mxu0 0.0
  %1041 = vmatpush2.msra.mxu0 0.0
  %1042 = vmatprep.subr.mxu0 0.0
  %1043 = vmatpush2.msra.mxu0 0.0
  %1044 = vmatprep.subr.mxu0 0.0
  %1045 = vmatpush2.msra.mxu0 0.0
  %1046 = vmatprep.subr.mxu0 0.0
  %1047 = vmatpush2.msra.mxu0 0.0
  %1048 = vmatprep.subr.mxu0 0.0
  %1049 = vmatpush2.msra.mxu0 0.0
  %1050 = vmatprep.subr.mxu0 0.0
  %1051 = vmatpush2.msra.mxu0 0.0
  %1052 = vmatprep.subr.mxu0 0.0
  %1053 = vmatpush2.msra.mxu0 0.0
  %1054 = vmatprep.subr.mxu0 0.0
  %1055 = vmatpush2.msra.mxu0 0.0
  %1056 = vmatprep.subr.mxu0 0.0
  %1057 = vmatpush2.msra.mxu0 0.0
  %1058 = vmatprep.subr.mxu0 0.0
  %1059 = vmatpush2.msra.mxu0 0.0
  %1060 = vmatprep.subr.mxu0 0.0
  %1061 = vmatpush2.msra.mxu0 0.0
  %1062 = vmatprep.subr.mxu0 0.0
  %1063 = vmatpush2.msra.mxu0 0.0
  %1064 = vmatprep.subr.mxu0 0.0
  %1065 = vmatpush2.msra.mxu0 0.0
  %1066 = vmatprep.mubr.f32.mxu0 0.0
  %1067 = vmatmul.mubr.f32.gmra.mxu0 %v1000
  %v1068 = vpop.f32.mrf.mxu0
  %v1069 = vadd.f32 0.0, %v1068
  %v1070 = vpop.f32.mrf.mxu0
  %1071 = vdwg.mxu0
  %v1072 = vadd.f32 %v996, %v1069
  %v1073 = vmul.f32 %v1072, 0.5
  %v1074 = vtanh.pop %v1073
  %v1075 = vmul.f32 %v1074, 0.5
  %v1076 = vadd.f32 %v1075, 0.5
  %v1077 = vmul.f32 %v1076, 2.0
  %v1078 = vsub.f32 %v1077, 1.0
  %v1079 = vmul.f32 %v1076, %v989
  %1081 = vrot.lane.b32.xlu0 %v1078, 64
  %v1082 = vpop.permute.xlu0 %1081
  %v1084 = vmul.f32 %v1076, %v1082
  %1086 = vrot.lane.b32.xlu0 %v1084, 32
  %v1087 = vpop.permute.xlu0 %1086
  %v1089 = vadd.f32 %v1079, %v1087
  %v1090 = vtanh.pop %v1089
  %1092 = vrot.lane.b32.xlu0 %v1090, 64
  %v1093 = vpop.permute.xlu0 %1092
  %v1095 = vmul.f32 %v1076, %v1093
  %v1096 = vld [vmem:[#allocation3 + $0x18] sm:$0xff]
  %1098 = vrot.lane.b32.xlu0 %v1095, 32
  %v1099 = vpop.permute.xlu0 %1098
  %v1100 = vsel %vm798, %v1099, 0
  %1102 = vmatprep.subr.mxu0 0.0
  %1103 = vmatpush1.msra.mxu0 0.0
  %1104 = vmatprep.subr.mxu0 0.0
  %1105 = vmatpush1.msra.mxu0 0.0
  %1106 = vmatprep.subr.mxu0 0.0
  %1107 = vmatpush1.msra.mxu0 0.0
  %1108 = vmatprep.subr.mxu0 0.0
  %1109 = vmatpush1.msra.mxu0 0.0
  %1110 = vmatprep.subr.mxu0 0.0
  %1111 = vmatpush1.msra.mxu0 0.0
  %1112 = vmatprep.subr.mxu0 0.0
  %1113 = vmatpush1.msra.mxu0 0.0
  %1114 = vmatprep.subr.mxu0 0.0
  %1115 = vmatpush1.msra.mxu0 0.0
  %1116 = vmatprep.subr.mxu0 0.0
  %1117 = vmatpush1.msra.mxu0 0.0
  %1118 = vmatprep.subr.mxu0 0.0
  %1119 = vmatpush1.msra.mxu0 0.0
  %1120 = vmatprep.subr.mxu0 0.0
  %1121 = vmatpush1.msra.mxu0 0.0
  %1122 = vmatprep.subr.mxu0 0.0
  %1123 = vmatpush1.msra.mxu0 0.0
  %1124 = vmatprep.subr.mxu0 0.0
  %1125 = vmatpush1.msra.mxu0 0.0
  %1126 = vmatprep.subr.mxu0 0.0
  %1127 = vmatpush1.msra.mxu0 %v796
  %1128 = vmatprep.subr.mxu0 0.0
  %1129 = vmatpush1.msra.mxu0 %v795
  %1130 = vmatprep.subr.mxu0 0.0
  %1131 = vmatpush1.msra.mxu0 %v794
  %1132 = vmatprep.subr.mxu0 0.0
  %1133 = vmatpush1.msra.mxu0 %v793
  %1134 = vmatprep.subr.mxu0 0.0
  %1135 = vmatpush2.msra.mxu0 0.0
  %1136 = vmatprep.subr.mxu0 0.0
  %1137 = vmatpush2.msra.mxu0 0.0
  %1138 = vmatprep.subr.mxu0 0.0
  %1139 = vmatpush2.msra.mxu0 0.0
  %1140 = vmatprep.subr.mxu0 0.0
  %1141 = vmatpush2.msra.mxu0 0.0
  %1142 = vmatprep.subr.mxu0 0.0
  %1143 = vmatpush2.msra.mxu0 0.0
  %1144 = vmatprep.subr.mxu0 0.0
  %1145 = vmatpush2.msra.mxu0 0.0
  %1146 = vmatprep.subr.mxu0 0.0
  %1147 = vmatpush2.msra.mxu0 0.0
  %1148 = vmatprep.subr.mxu0 0.0
  %1149 = vmatpush2.msra.mxu0 0.0
  %1150 = vmatprep.subr.mxu0 0.0
  %1151 = vmatpush2.msra.mxu0 0.0
  %1152 = vmatprep.subr.mxu0 0.0
  %1153 = vmatpush2.msra.mxu0 0.0
  %1154 = vmatprep.subr.mxu0 0.0
  %1155 = vmatpush2.msra.mxu0 0.0
  %1156 = vmatprep.subr.mxu0 0.0
  %1157 = vmatpush2.msra.mxu0 0.0
  %1158 = vmatprep.subr.mxu0 0.0
  %1159 = vmatpush2.msra.mxu0 0.0
  %1160 = vmatprep.subr.mxu0 0.0
  %1161 = vmatpush2.msra.mxu0 0.0
  %1162 = vmatprep.subr.mxu0 0.0
  %1163 = vmatpush2.msra.mxu0 0.0
  %1164 = vmatprep.subr.mxu0 0.0
  %1165 = vmatpush2.msra.mxu0 0.0
  %1166 = vmatprep.mubr.f32.mxu0 0.0
  %1167 = vmatmul.mubr.f32.gmra.mxu0 %v1100
  %v1168 = vpop.f32.mrf.mxu0
  %v1169 = vadd.f32 0.0, %v1168
  %v1170 = vpop.f32.mrf.mxu0
  %1171 = vdwg.mxu0
  %v1172 = vadd.f32 %v1096, %v1169
  %v1173 = vmul.f32 %v1172, 0.5
  %v1174 = vtanh.pop %v1173
  %v1175 = vmul.f32 %v1174, 0.5
  %v1176 = vadd.f32 %v1175, 0.5
  %v1177 = vmul.f32 %v1176, 2.0
  %v1178 = vsub.f32 %v1177, 1.0
  %v1179 = vmul.f32 %v1176, %v1089
  %1181 = vrot.lane.b32.xlu0 %v1178, 64
  %v1182 = vpop.permute.xlu0 %1181
  %v1184 = vmul.f32 %v1176, %v1182
  %1186 = vrot.lane.b32.xlu0 %v1184, 32
  %v1187 = vpop.permute.xlu0 %1186
  %v1189 = vadd.f32 %v1179, %v1187
  %v1190 = vtanh.pop %v1189
  %1192 = vrot.lane.b32.xlu0 %v1190, 64
  %v1193 = vpop.permute.xlu0 %1192
  %v1195 = vmul.f32 %v1176, %v1193
  %v1196 = vld [vmem:[#allocation3 + $0x20] sm:$0xff]
  %1198 = vrot.lane.b32.xlu0 %v1195, 32
  %v1199 = vpop.permute.xlu0 %1198
  %v1200 = vsel %vm798, %v1199, 0
  %1202 = vmatprep.subr.mxu0 0.0
  %1203 = vmatpush1.msra.mxu0 0.0
  %1204 = vmatprep.subr.mxu0 0.0
  %1205 = vmatpush1.msra.mxu0 0.0
  %1206 = vmatprep.subr.mxu0 0.0
  %1207 = vmatpush1.msra.mxu0 0.0
  %1208 = vmatprep.subr.mxu0 0.0
  %1209 = vmatpush1.msra.mxu0 0.0
  %1210 = vmatprep.subr.mxu0 0.0
  %1211 = vmatpush1.msra.mxu0 0.0
  %1212 = vmatprep.subr.mxu0 0.0
  %1213 = vmatpush1.msra.mxu0 0.0
  %1214 = vmatprep.subr.mxu0 0.0
  %1215 = vmatpush1.msra.mxu0 0.0
  %1216 = vmatprep.subr.mxu0 0.0
  %1217 = vmatpush1.msra.mxu0 0.0
  %1218 = vmatprep.subr.mxu0 0.0
  %1219 = vmatpush1.msra.mxu0 0.0
  %1220 = vmatprep.subr.mxu0 0.0
  %1221 = vmatpush1.msra.mxu0 0.0
  %1222 = vmatprep.subr.mxu0 0.0
  %1223 = vmatpush1.msra.mxu0 0.0
  %1224 = vmatprep.subr.mxu0 0.0
  %1225 = vmatpush1.msra.mxu0 0.0
  %1226 = vmatprep.subr.mxu0 0.0
  %1227 = vmatpush1.msra.mxu0 %v796
  %1228 = vmatprep.subr.mxu0 0.0
  %1229 = vmatpush1.msra.mxu0 %v795
  %1230 = vmatprep.subr.mxu0 0.0
  %1231 = vmatpush1.msra.mxu0 %v794
  %1232 = vmatprep.subr.mxu0 0.0
  %1233 = vmatpush1.msra.mxu0 %v793
  %1234 = vmatprep.subr.mxu0 0.0
  %1235 = vmatpush2.msra.mxu0 0.0
  %1236 = vmatprep.subr.mxu0 0.0
  %1237 = vmatpush2.msra.mxu0 0.0
  %1238 = vmatprep.subr.mxu0 0.0
  %1239 = vmatpush2.msra.mxu0 0.0
  %1240 = vmatprep.subr.mxu0 0.0
  %1241 = vmatpush2.msra.mxu0 0.0
  %1242 = vmatprep.subr.mxu0 0.0
  %1243 = vmatpush2.msra.mxu0 0.0
  %1244 = vmatprep.subr.mxu0 0.0
  %1245 = vmatpush2.msra.mxu0 0.0
  %1246 = vmatprep.subr.mxu0 0.0
  %1247 = vmatpush2.msra.mxu0 0.0
  %1248 = vmatprep.subr.mxu0 0.0
  %1249 = vmatpush2.msra.mxu0 0.0
  %1250 = vmatprep.subr.mxu0 0.0
  %1251 = vmatpush2.msra.mxu0 0.0
  %1252 = vmatprep.subr.mxu0 0.0
  %1253 = vmatpush2.msra.mxu0 0.0
  %1254 = vmatprep.subr.mxu0 0.0
  %1255 = vmatpush2.msra.mxu0 0.0
  %1256 = vmatprep.subr.mxu0 0.0
  %1257 = vmatpush2.msra.mxu0 0.0
  %1258 = vmatprep.subr.mxu0 0.0
  %1259 = vmatpush2.msra.mxu0 0.0
  %1260 = vmatprep.subr.mxu0 0.0
  %1261 = vmatpush2.msra.mxu0 0.0
  %1262 = vmatprep.subr.mxu0 0.0
  %1263 = vmatpush2.msra.mxu0 0.0
  %1264 = vmatprep.subr.mxu0 0.0
  %1265 = vmatpush2.msra.mxu0 0.0
  %1266 = vmatprep.mubr.f32.mxu0 0.0
  %1267 = vmatmul.mubr.f32.gmra.mxu0 %v1200
  %v1268 = vpop.f32.mrf.mxu0
  %v1269 = vadd.f32 0.0, %v1268
  %v1270 = vpop.f32.mrf.mxu0
  %1271 = vdwg.mxu0
  %v1272 = vadd.f32 %v1196, %v1269
  %v1273 = vmul.f32 %v1272, 0.5
  %v1274 = vtanh.pop %v1273
  %v1275 = vmul.f32 %v1274, 0.5
  %v1276 = vadd.f32 %v1275, 0.5
  %v1277 = vmul.f32 %v1276, 2.0
  %v1278 = vsub.f32 %v1277, 1.0
  %v1279 = vmul.f32 %v1276, %v1189
  %1281 = vrot.lane.b32.xlu0 %v1278, 64
  %v1282 = vpop.permute.xlu0 %1281
  %v1284 = vmul.f32 %v1276, %v1282
  %1286 = vrot.lane.b32.xlu0 %v1284, 32
  %v1287 = vpop.permute.xlu0 %1286
  %v1289 = vadd.f32 %v1279, %v1287
  %v1290 = vtanh.pop %v1289
  %1292 = vrot.lane.b32.xlu0 %v1290, 64
  %v1293 = vpop.permute.xlu0 %1292
  %v1295 = vmul.f32 %v1276, %v1293
  %v1296 = vld [vmem:[#allocation3 + $0x28] sm:$0xff]
  %1298 = vrot.lane.b32.xlu0 %v1295, 32
  %v1299 = vpop.permute.xlu0 %1298
  %v1300 = vsel %vm798, %v1299, 0
  %1302 = vmatprep.subr.mxu0 0.0
  %1303 = vmatpush1.msra.mxu0 0.0
  %1304 = vmatprep.subr.mxu0 0.0
  %1305 = vmatpush1.msra.mxu0 0.0
  %1306 = vmatprep.subr.mxu0 0.0
  %1307 = vmatpush1.msra.mxu0 0.0
  %1308 = vmatprep.subr.mxu0 0.0
  %1309 = vmatpush1.msra.mxu0 0.0
  %1310 = vmatprep.subr.mxu0 0.0
  %1311 = vmatpush1.msra.mxu0 0.0
  %1312 = vmatprep.subr.mxu0 0.0
  %1313 = vmatpush1.msra.mxu0 0.0
  %1314 = vmatprep.subr.mxu0 0.0
  %1315 = vmatpush1.msra.mxu0 0.0
  %1316 = vmatprep.subr.mxu0 0.0
  %1317 = vmatpush1.msra.mxu0 0.0
  %1318 = vmatprep.subr.mxu0 0.0
  %1319 = vmatpush1.msra.mxu0 0.0
  %1320 = vmatprep.subr.mxu0 0.0
  %1321 = vmatpush1.msra.mxu0 0.0
  %1322 = vmatprep.subr.mxu0 0.0
  %1323 = vmatpush1.msra.mxu0 0.0
  %1324 = vmatprep.subr.mxu0 0.0
  %1325 = vmatpush1.msra.mxu0 0.0
  %1326 = vmatprep.subr.mxu0 0.0
  %1327 = vmatpush1.msra.mxu0 %v796
  %1328 = vmatprep.subr.mxu0 0.0
  %1329 = vmatpush1.msra.mxu0 %v795
  %1330 = vmatprep.subr.mxu0 0.0
  %1331 = vmatpush1.msra.mxu0 %v794
  %1332 = vmatprep.subr.mxu0 0.0
  %1333 = vmatpush1.msra.mxu0 %v793
  %1334 = vmatprep.subr.mxu0 0.0
  %1335 = vmatpush2.msra.mxu0 0.0
  %1336 = vmatprep.subr.mxu0 0.0
  %1337 = vmatpush2.msra.mxu0 0.0
  %1338 = vmatprep.subr.mxu0 0.0
  %1339 = vmatpush2.msra.mxu0 0.0
  %1340 = vmatprep.subr.mxu0 0.0
  %1341 = vmatpush2.msra.mxu0 0.0
  %1342 = vmatprep.subr.mxu0 0.0
  %1343 = vmatpush2.msra.mxu0 0.0
  %1344 = vmatprep.subr.mxu0 0.0
  %1345 = vmatpush2.msra.mxu0 0.0
  %1346 = vmatprep.subr.mxu0 0.0
  %1347 = vmatpush2.msra.mxu0 0.0
  %1348 = vmatprep.subr.mxu0 0.0
  %1349 = vmatpush2.msra.mxu0 0.0
  %1350 = vmatprep.subr.mxu0 0.0
  %1351 = vmatpush2.msra.mxu0 0.0
  %1352 = vmatprep.subr.mxu0 0.0
  %1353 = vmatpush2.msra.mxu0 0.0
  %1354 = vmatprep.subr.mxu0 0.0
  %1355 = vmatpush2.msra.mxu0 0.0
  %1356 = vmatprep.subr.mxu0 0.0
  %1357 = vmatpush2.msra.mxu0 0.0
  %1358 = vmatprep.subr.mxu0 0.0
  %1359 = vmatpush2.msra.mxu0 0.0
  %1360 = vmatprep.subr.mxu0 0.0
  %1361 = vmatpush2.msra.mxu0 0.0
  %1362 = vmatprep.subr.mxu0 0.0
  %1363 = vmatpush2.msra.mxu0 0.0
  %1364 = vmatprep.subr.mxu0 0.0
  %1365 = vmatpush2.msra.mxu0 0.0
  %1366 = vmatprep.mubr.f32.mxu0 0.0
  %1367 = vmatmul.mubr.f32.gmra.mxu0 %v1300
  %v1368 = vpop.f32.mrf.mxu0
  %v1369 = vadd.f32 0.0, %v1368
  %v1370 = vpop.f32.mrf.mxu0
  %1371 = vdwg.mxu0
  %v1372 = vadd.f32 %v1296, %v1369
  %v1373 = vmul.f32 %v1372, 0.5
  %v1374 = vtanh.pop %v1373
  %v1375 = vmul.f32 %v1374, 0.5
  %v1376 = vadd.f32 %v1375, 0.5
  %v1377 = vmul.f32 %v1376, 2.0
  %v1378 = vsub.f32 %v1377, 1.0
  %v1379 = vmul.f32 %v1376, %v1289
  %1381 = vrot.lane.b32.xlu0 %v1378, 64
  %v1382 = vpop.permute.xlu0 %1381
  %v1384 = vmul.f32 %v1376, %v1382
  %1386 = vrot.lane.b32.xlu0 %v1384, 32
  %v1387 = vpop.permute.xlu0 %1386
  %v1389 = vadd.f32 %v1379, %v1387
  %v1390 = vtanh.pop %v1389
  %1392 = vrot.lane.b32.xlu0 %v1390, 64
  %v1393 = vpop.permute.xlu0 %1392
  %v1395 = vmul.f32 %v1376, %v1393
  %v1396 = vld [vmem:[#allocation3 + $0x30] sm:$0xff]
  %1398 = vrot.lane.b32.xlu0 %v1395, 32
  %v1399 = vpop.permute.xlu0 %1398
  %v1400 = vsel %vm798, %v1399, 0
  %1402 = vmatprep.subr.mxu0 0.0
  %1403 = vmatpush1.msra.mxu0 0.0
  %1404 = vmatprep.subr.mxu0 0.0
  %1405 = vmatpush1.msra.mxu0 0.0
  %1406 = vmatprep.subr.mxu0 0.0
  %1407 = vmatpush1.msra.mxu0 0.0
  %1408 = vmatprep.subr.mxu0 0.0
  %1409 = vmatpush1.msra.mxu0 0.0
  %1410 = vmatprep.subr.mxu0 0.0
  %1411 = vmatpush1.msra.mxu0 0.0
  %1412 = vmatprep.subr.mxu0 0.0
  %1413 = vmatpush1.msra.mxu0 0.0
  %1414 = vmatprep.subr.mxu0 0.0
  %1415 = vmatpush1.msra.mxu0 0.0
  %1416 = vmatprep.subr.mxu0 0.0
  %1417 = vmatpush1.msra.mxu0 0.0
  %1418 = vmatprep.subr.mxu0 0.0
  %1419 = vmatpush1.msra.mxu0 0.0
  %1420 = vmatprep.subr.mxu0 0.0
  %1421 = vmatpush1.msra.mxu0 0.0
  %1422 = vmatprep.subr.mxu0 0.0
  %1423 = vmatpush1.msra.mxu0 0.0
  %1424 = vmatprep.subr.mxu0 0.0
  %1425 = vmatpush1.msra.mxu0 0.0
  %1426 = vmatprep.subr.mxu0 0.0
  %1427 = vmatpush1.msra.mxu0 %v796
  %1428 = vmatprep.subr.mxu0 0.0
  %1429 = vmatpush1.msra.mxu0 %v795
  %1430 = vmatprep.subr.mxu0 0.0
  %1431 = vmatpush1.msra.mxu0 %v794
  %1432 = vmatprep.subr.mxu0 0.0
  %1433 = vmatpush1.msra.mxu0 %v793
  %1434 = vmatprep.subr.mxu0 0.0
  %1435 = vmatpush2.msra.mxu0 0.0
  %1436 = vmatprep.subr.mxu0 0.0
  %1437 = vmatpush2.msra.mxu0 0.0
  %1438 = vmatprep.subr.mxu0 0.0
  %1439 = vmatpush2.msra.mxu0 0.0
  %1440 = vmatprep.subr.mxu0 0.0
  %1441 = vmatpush2.msra.mxu0 0.0
  %1442 = vmatprep.subr.mxu0 0.0
  %1443 = vmatpush2.msra.mxu0 0.0
  %1444 = vmatprep.subr.mxu0 0.0
  %1445 = vmatpush2.msra.mxu0 0.0
  %1446 = vmatprep.subr.mxu0 0.0
  %1447 = vmatpush2.msra.mxu0 0.0
  %1448 = vmatprep.subr.mxu0 0.0
  %1449 = vmatpush2.msra.mxu0 0.0
  %1450 = vmatprep.subr.mxu0 0.0
  %1451 = vmatpush2.msra.mxu0 0.0
  %1452 = vmatprep.subr.mxu0 0.0
  %1453 = vmatpush2.msra.mxu0 0.0
  %1454 = vmatprep.subr.mxu0 0.0
  %1455 = vmatpush2.msra.mxu0 0.0
  %1456 = vmatprep.subr.mxu0 0.0
  %1457 = vmatpush2.msra.mxu0 0.0
  %1458 = vmatprep.subr.mxu0 0.0
  %1459 = vmatpush2.msra.mxu0 0.0
  %1460 = vmatprep.subr.mxu0 0.0
  %1461 = vmatpush2.msra.mxu0 0.0
  %1462 = vmatprep.subr.mxu0 0.0
  %1463 = vmatpush2.msra.mxu0 0.0
  %1464 = vmatprep.subr.mxu0 0.0
  %1465 = vmatpush2.msra.mxu0 0.0
  %1466 = vmatprep.mubr.f32.mxu0 0.0
  %1467 = vmatmul.mubr.f32.gmra.mxu0 %v1400
  %v1468 = vpop.f32.mrf.mxu0
  %v1469 = vadd.f32 0.0, %v1468
  %v1470 = vpop.f32.mrf.mxu0
  %1471 = vdwg.mxu0
  %v1472 = vadd.f32 %v1396, %v1469
  %v1473 = vmul.f32 %v1472, 0.5
  %v1474 = vtanh.pop %v1473
  %v1475 = vmul.f32 %v1474, 0.5
  %v1476 = vadd.f32 %v1475, 0.5
  %v1477 = vmul.f32 %v1476, 2.0
  %v1478 = vsub.f32 %v1477, 1.0
  %v1479 = vmul.f32 %v1476, %v1389
  %1481 = vrot.lane.b32.xlu0 %v1478, 64
  %v1482 = vpop.permute.xlu0 %1481
  %v1484 = vmul.f32 %v1476, %v1482
  %1486 = vrot.lane.b32.xlu0 %v1484, 32
  %v1487 = vpop.permute.xlu0 %1486
  %v1489 = vadd.f32 %v1479, %v1487
  %v1490 = vtanh.pop %v1489
  %1492 = vrot.lane.b32.xlu0 %v1490, 64
  %v1493 = vpop.permute.xlu0 %1492
  %v1495 = vmul.f32 %v1476, %v1493
  %v1496 = vld [vmem:[#allocation3 + $0x38] sm:$0xff]
  %1498 = vrot.lane.b32.xlu0 %v1495, 32
  %v1499 = vpop.permute.xlu0 %1498
  %v1500 = vsel %vm798, %v1499, 0
  %1502 = vmatprep.subr.mxu0 0.0
  %1503 = vmatpush1.msra.mxu0 0.0
  %1504 = vmatprep.subr.mxu0 0.0
  %1505 = vmatpush1.msra.mxu0 0.0
  %1506 = vmatprep.subr.mxu0 0.0
  %1507 = vmatpush1.msra.mxu0 0.0
  %1508 = vmatprep.subr.mxu0 0.0
  %1509 = vmatpush1.msra.mxu0 0.0
  %1510 = vmatprep.subr.mxu0 0.0
  %1511 = vmatpush1.msra.mxu0 0.0
  %1512 = vmatprep.subr.mxu0 0.0
  %1513 = vmatpush1.msra.mxu0 0.0
  %1514 = vmatprep.subr.mxu0 0.0
  %1515 = vmatpush1.msra.mxu0 0.0
  %1516 = vmatprep.subr.mxu0 0.0
  %1517 = vmatpush1.msra.mxu0 0.0
  %1518 = vmatprep.subr.mxu0 0.0
  %1519 = vmatpush1.msra.mxu0 0.0
  %1520 = vmatprep.subr.mxu0 0.0
  %1521 = vmatpush1.msra.mxu0 0.0
  %1522 = vmatprep.subr.mxu0 0.0
  %1523 = vmatpush1.msra.mxu0 0.0
  %1524 = vmatprep.subr.mxu0 0.0
  %1525 = vmatpush1.msra.mxu0 0.0
  %1526 = vmatprep.subr.mxu0 0.0
  %1527 = vmatpush1.msra.mxu0 %v796
  %1528 = vmatprep.subr.mxu0 0.0
  %1529 = vmatpush1.msra.mxu0 %v795
  %1530 = vmatprep.subr.mxu0 0.0
  %1531 = vmatpush1.msra.mxu0 %v794
  %1532 = vmatprep.subr.mxu0 0.0
  %1533 = vmatpush1.msra.mxu0 %v793
  %1534 = vmatprep.subr.mxu0 0.0
  %1535 = vmatpush2.msra.mxu0 0.0
  %1536 = vmatprep.subr.mxu0 0.0
  %1537 = vmatpush2.msra.mxu0 0.0
  %1538 = vmatprep.subr.mxu0 0.0
  %1539 = vmatpush2.msra.mxu0 0.0
  %1540 = vmatprep.subr.mxu0 0.0
  %1541 = vmatpush2.msra.mxu0 0.0
  %1542 = vmatprep.subr.mxu0 0.0
  %1543 = vmatpush2.msra.mxu0 0.0
  %1544 = vmatprep.subr.mxu0 0.0
  %1545 = vmatpush2.msra.mxu0 0.0
  %1546 = vmatprep.subr.mxu0 0.0
  %1547 = vmatpush2.msra.mxu0 0.0
  %1548 = vmatprep.subr.mxu0 0.0
  %1549 = vmatpush2.msra.mxu0 0.0
  %1550 = vmatprep.subr.mxu0 0.0
  %1551 = vmatpush2.msra.mxu0 0.0
  %1552 = vmatprep.subr.mxu0 0.0
  %1553 = vmatpush2.msra.mxu0 0.0
  %1554 = vmatprep.subr.mxu0 0.0
  %1555 = vmatpush2.msra.mxu0 0.0
  %1556 = vmatprep.subr.mxu0 0.0
  %1557 = vmatpush2.msra.mxu0 0.0
  %1558 = vmatprep.subr.mxu0 0.0
  %1559 = vmatpush2.msra.mxu0 0.0
  %1560 = vmatprep.subr.mxu0 0.0
  %1561 = vmatpush2.msra.mxu0 0.0
  %1562 = vmatprep.subr.mxu0 0.0
  %1563 = vmatpush2.msra.mxu0 0.0
  %1564 = vmatprep.subr.mxu0 0.0
  %1565 = vmatpush2.msra.mxu0 0.0
  %1566 = vmatprep.mubr.f32.mxu0 0.0
  %1567 = vmatmul.mubr.f32.gmra.mxu0 %v1500
  %v1568 = vpop.f32.mrf.mxu0
  %v1569 = vadd.f32 0.0, %v1568
  %v1570 = vpop.f32.mrf.mxu0
  %1571 = vdwg.mxu0
  %v1572 = vadd.f32 %v1496, %v1569
  %v1573 = vmul.f32 %v1572, 0.5
  %v1574 = vtanh.pop %v1573
  %v1575 = vmul.f32 %v1574, 0.5
  %v1576 = vadd.f32 %v1575, 0.5
  %v1577 = vmul.f32 %v1576, 2.0
  %v1578 = vsub.f32 %v1577, 1.0
  %v1579 = vmul.f32 %v1576, %v1489
  %1581 = vrot.lane.b32.xlu0 %v1578, 64
  %v1582 = vpop.permute.xlu0 %1581
  %v1584 = vmul.f32 %v1576, %v1582
  %1586 = vrot.lane.b32.xlu0 %v1584, 32
  %v1587 = vpop.permute.xlu0 %1586
  %v1589 = vadd.f32 %v1579, %v1587
  %v1590 = vtanh.pop %v1589
  %1592 = vrot.lane.b32.xlu0 %v1590, 64
  %v1593 = vpop.permute.xlu0 %1592
  %v1595 = vmul.f32 %v1576, %v1593
  %v1596 = vld [vmem:[#allocation2 + $0x1c] sm:$0xf]
  %v1597 = vld [vmem:[%s6] sm:$0xf]
  %v1598 = vld [vmem:[%s6 + $0x4] sm:$0xf]
  %v1599 = vld [vmem:[%s7] sm:$0x1]
  %v1601 = vlaneseq
  %v1602 = vshrl.u32 %v1601, 7
  %v1603 = vsub.s32 0, %v1602
  %v1604 = vrot.slane %v1599, %v1603
  %v1608 = vunpack.c.l.b16 %v1597
  %v1609 = vunpack.c.l.b16 %v1598
  %v1610 = vpack.c.b16 %v1609, %v1608
  %v1613 = vsel %vm87, %v1596, 0
  %1615 = vmatprep.subr.bf16.mxu0 0
  %1616 = vmatpush1.bf16.msra.mxu0 0
  %1617 = vmatprep.subr.bf16.mxu0 0
  %1618 = vmatpush1.bf16.msra.mxu0 0
  %1619 = vmatprep.subr.bf16.mxu0 0
  %1620 = vmatpush1.bf16.msra.mxu0 0
  %1621 = vmatprep.subr.bf16.mxu0 0
  %1622 = vmatpush1.bf16.msra.mxu0 0
  %1623 = vmatprep.subr.bf16.mxu0 0
  %1624 = vmatpush1.bf16.msra.mxu0 0
  %1625 = vmatprep.subr.bf16.mxu0 0
  %1626 = vmatpush1.bf16.msra.mxu0 0
  %1627 = vmatprep.subr.bf16.mxu0 0
  %1628 = vmatpush1.bf16.msra.mxu0 0
  %1629 = vmatprep.subr.bf16.mxu0 0
  %1630 = vmatpush1.bf16.msra.mxu0 %v1610
  %1631 = vmatprep.subr.bf16.mxu0 0
  %1632 = vmatpush2.bf16.msra.mxu0 0
  %1633 = vmatprep.subr.bf16.mxu0 0
  %1634 = vmatpush2.bf16.msra.mxu0 0
  %1635 = vmatprep.subr.bf16.mxu0 0
  %1636 = vmatpush2.bf16.msra.mxu0 0
  %1637 = vmatprep.subr.bf16.mxu0 0
  %1638 = vmatpush2.bf16.msra.mxu0 0
  %1639 = vmatprep.subr.bf16.mxu0 0
  %1640 = vmatpush2.bf16.msra.mxu0 0
  %1641 = vmatprep.subr.bf16.mxu0 0
  %1642 = vmatpush2.bf16.msra.mxu0 0
  %1643 = vmatprep.subr.bf16.mxu0 0
  %1644 = vmatpush2.bf16.msra.mxu0 0
  %1645 = vmatprep.subr.bf16.mxu0 0
  %1646 = vmatpush2.bf16.msra.mxu0 0
  %1647 = vmatprep.mubr.bf16.mxu0 0
  %1648 = vmatmul.mubr.bf16.gmra.mxu0 %v1613
  %v1649 = vpop.f32.mrf.mxu0
  %v1650 = vadd.f32 %v1604, %v1649
  %v1651 = vpop.f32.mrf.mxu0
  %v1652 = vpop.f32.mrf.mxu0
  %v1653 = vpop.f32.mrf.mxu0
  %1654 = vdwg.mxu0
  %v1655 = vmul.f32 %v1650, 0.5
  %v1656 = vtanh.pop %v1655
  %v1657 = vmul.f32 %v1656, 0.5
  %v1658 = vadd.f32 %v1657, 0.5
  %v1659 = vmul.f32 %v1658, 2.0
  %v1660 = vsub.f32 %v1659, 1.0
  %1662 = vrot.lane.b32.xlu0 %v1660, 64
  %v1663 = vpop.permute.xlu0 %1662
  %v1665 = vmul.f32 %v1658, %v1663
  %v1666 = vtanh.pop %v1665
  %1668 = vrot.lane.b32.xlu0 %v1666, 96
  %v1669 = vpop.permute.xlu0 %1668
  %v1671 = vmul.f32 %v1658, %v1669
  %1673 = vrot.lane.b32.xlu0 %v1595, 32
  %v1674 = vpop.permute.xlu0 %1673
  %1677 = vrot.lane.b32.xlu0 %v1671, 64
  %v1678 = vpop.permute.xlu0 %1677
  %v1680 = vsel %vm798, %v1674, %v1678
  %v1681 = vpack.c.bf16 %v1680, %v1680
  %v1682 = vld [vmem:[%s8] sm:$0xff]
  %v1683 = vld [vmem:[%s8 + $0x8] sm:$0xff]
  %v1684 = vld [vmem:[%s8 + $0x10] sm:$0xf]
  %v1685 = vld [vmem:[%s8 + $0x14] sm:$0xff]
  %v1686 = vld [vmem:[%s8 + $0x1c] sm:$0xff]
  %v1687 = vld [vmem:[%s8 + $0x24] sm:$0xf]
  %v1688 = vld [vmem:[%s8 + $0x28] sm:$0xff]
  %v1689 = vld [vmem:[%s8 + $0x30] sm:$0xff]
  %v1690 = vld [vmem:[%s8 + $0x38] sm:$0xf]
  %v1691 = vld [vmem:[%s8 + $0x3c] sm:$0xff]
  %v1692 = vld [vmem:[%s8 + $0x44] sm:$0xff]
  %v1693 = vld [vmem:[%s8 + $0x4c] sm:$0xf]
  %v1694 = vld [vmem:[%s8 + $0x50] sm:$0xff]
  %v1695 = vld [vmem:[%s8 + $0x58] sm:$0xff]
  %v1696 = vld [vmem:[%s8 + $0x60] sm:$0xf]
  %v1697 = vld [vmem:[%s8 + $0x64] sm:$0xff]
  %v1698 = vld [vmem:[%s8 + $0x6c] sm:$0xff]
  %v1699 = vld [vmem:[%s8 + $0x74] sm:$0xf]
  %v1700 = vld [vmem:[%s8 + $0x78] sm:$0xff]
  %v1701 = vld [vmem:[%s8 + $0x80] sm:$0xff]
  %v1702 = vld [vmem:[%s8 + $0x88] sm:$0xf]
  %v1703 = vld [vmem:[%s8 + $0x8c] sm:$0xff]
  %v1704 = vld [vmem:[%s8 + $0x94] sm:$0xff]
  %v1705 = vld [vmem:[%s8 + $0x9c] sm:$0xf]
  %v1706 = vld [vmem:[%s9] sm:$0x1f]
  %v1708 = vlaneseq
  %v1709 = vshrl.u32 %v1708, 7
  %v1710 = vsub.s32 0, %v1709
  %v1711 = vrot.slane %v1706, %v1710
  %v1712 = vlaneseq
  %v1713 = vshrl.u32 %v1712, 7
  %v1714 = vsub.s32 1, %v1713
  %v1715 = vrot.slane %v1706, %v1714
  %v1716 = vlaneseq
  %v1717 = vshrl.u32 %v1716, 7
  %v1718 = vsub.s32 2, %v1717
  %v1719 = vrot.slane %v1706, %v1718
  %v1720 = vlaneseq
  %v1721 = vshrl.u32 %v1720, 7
  %v1722 = vsub.s32 3, %v1721
  %v1723 = vrot.slane %v1706, %v1722
  %v1724 = vlaneseq
  %v1725 = vshrl.u32 %v1724, 7
  %v1726 = vsub.s32 4, %v1725
  %v1727 = vrot.slane %v1706, %v1726
  %v1757 = vunpack.c.l.b16 %v1682
  %v1758 = vunpack.c.h.b16 %v1682
  %v1759 = vunpack.c.l.b16 %v1683
  %v1760 = vunpack.c.h.b16 %v1683
  %v1761 = vunpack.c.l.b16 %v1684
  %v1762 = vunpack.c.l.b16 %v1685
  %v1763 = vunpack.c.h.b16 %v1685
  %v1764 = vunpack.c.l.b16 %v1686
  %v1765 = vunpack.c.h.b16 %v1686
  %v1766 = vunpack.c.l.b16 %v1687
  %v1767 = vunpack.c.l.b16 %v1688
  %v1768 = vunpack.c.h.b16 %v1688
  %v1769 = vunpack.c.l.b16 %v1689
  %v1770 = vunpack.c.h.b16 %v1689
  %v1771 = vunpack.c.l.b16 %v1690
  %v1772 = vunpack.c.l.b16 %v1691
  %v1773 = vunpack.c.h.b16 %v1691
  %v1774 = vunpack.c.l.b16 %v1692
  %v1775 = vunpack.c.h.b16 %v1692
  %v1776 = vunpack.c.l.b16 %v1693
  %v1777 = vunpack.c.l.b16 %v1694
  %v1778 = vunpack.c.h.b16 %v1694
  %v1779 = vunpack.c.l.b16 %v1695
  %v1780 = vunpack.c.h.b16 %v1695
  %v1781 = vunpack.c.l.b16 %v1696
  %v1782 = vunpack.c.l.b16 %v1697
  %v1783 = vunpack.c.h.b16 %v1697
  %v1784 = vunpack.c.l.b16 %v1698
  %v1785 = vunpack.c.h.b16 %v1698
  %v1786 = vunpack.c.l.b16 %v1699
  %v1787 = vunpack.c.l.b16 %v1700
  %v1788 = vunpack.c.h.b16 %v1700
  %v1789 = vunpack.c.l.b16 %v1701
  %v1790 = vunpack.c.h.b16 %v1701
  %v1791 = vunpack.c.l.b16 %v1702
  %v1792 = vunpack.c.l.b16 %v1703
  %v1793 = vunpack.c.h.b16 %v1703
  %v1794 = vunpack.c.l.b16 %v1704
  %v1795 = vunpack.c.h.b16 %v1704
  %v1796 = vunpack.c.l.b16 %v1705
  %v1797 = vpack.c.b16 %v1762, %v1757
  %v1798 = vpack.c.b16 %v1763, %v1758
  %v1799 = vpack.c.b16 %v1764, %v1759
  %v1800 = vpack.c.b16 %v1765, %v1760
  %v1801 = vpack.c.b16 %v1766, %v1761
  %v1802 = vpack.c.b16 %v1772, %v1767
  %v1803 = vpack.c.b16 %v1773, %v1768
  %v1804 = vpack.c.b16 %v1774, %v1769
  %v1805 = vpack.c.b16 %v1775, %v1770
  %v1806 = vpack.c.b16 %v1776, %v1771
  %v1807 = vpack.c.b16 %v1782, %v1777
  %v1808 = vpack.c.b16 %v1783, %v1778
  %v1809 = vpack.c.b16 %v1784, %v1779
  %v1810 = vpack.c.b16 %v1785, %v1780
  %v1811 = vpack.c.b16 %v1786, %v1781
  %v1812 = vpack.c.b16 %v1792, %v1787
  %v1813 = vpack.c.b16 %v1793, %v1788
  %v1814 = vpack.c.b16 %v1794, %v1789
  %v1815 = vpack.c.b16 %v1795, %v1790
  %v1816 = vpack.c.b16 %v1796, %v1791
  %vm1837 = vcmask 523264
  %v1839 = vsel %vm1837, %v1681, 0
  %1841 = vmatprep.subr.bf16.mxu0 0
  %1842 = vmatpush1.bf16.msra.mxu0 0
  %1843 = vmatprep.subr.bf16.mxu0 0
  %1844 = vmatpush1.bf16.msra.mxu0 0
  %1845 = vmatprep.subr.bf16.mxu0 0
  %1846 = vmatpush1.bf16.msra.mxu0 0
  %1847 = vmatprep.subr.bf16.mxu0 0
  %1848 = vmatpush1.bf16.msra.mxu0 0
  %1849 = vmatprep.subr.bf16.mxu0 %v1813
  %1850 = vmatpush1.bf16.msra.mxu0 %v1812
  %1851 = vmatprep.subr.bf16.mxu0 %v1808
  %1852 = vmatpush1.bf16.msra.mxu0 %v1807
  %1853 = vmatprep.subr.bf16.mxu0 %v1803
  %1854 = vmatpush1.bf16.msra.mxu0 %v1802
  %1855 = vmatprep.subr.bf16.mxu0 %v1798
  %1856 = vmatpush1.bf16.msra.mxu0 %v1797
  %1857 = vmatprep.subr.bf16.mxu0 0
  %1858 = vmatpush2.bf16.msra.mxu0 0
  %1859 = vmatprep.subr.bf16.mxu0 0
  %1860 = vmatpush2.bf16.msra.mxu0 0
  %1861 = vmatprep.subr.bf16.mxu0 0
  %1862 = vmatpush2.bf16.msra.mxu0 0
  %1863 = vmatprep.subr.bf16.mxu0 0
  %1864 = vmatpush2.bf16.msra.mxu0 0
  %1865 = vmatprep.subr.bf16.mxu0 0
  %1866 = vmatpush2.bf16.msra.mxu0 0
  %1867 = vmatprep.subr.bf16.mxu0 0
  %1868 = vmatpush2.bf16.msra.mxu0 0
  %1869 = vmatprep.subr.bf16.mxu0 0
  %1870 = vmatpush2.bf16.msra.mxu0 0
  %1871 = vmatprep.subr.bf16.mxu0 0
  %1872 = vmatpush2.bf16.msra.mxu0 0
  %1873 = vmatprep.mubr.bf16.mxu0 0
  %1874 = vmatmul.mubr.bf16.gmra.mxu0 %v1839
  %v1875 = vpop.f32.mrf.mxu0
  %v1876 = vadd.f32 %v1711, %v1875
  %v1877 = vpop.f32.mrf.mxu0
  %v1878 = vadd.f32 %v1715, %v1877
  %v1879 = vpop.f32.mrf.mxu0
  %v1880 = vpop.f32.mrf.mxu0
  %1881 = vdwg.mxu0
  %1882 = vmatprep.subr.bf16.mxu0 0
  %1883 = vmatpush1.bf16.msra.mxu0 0
  %1884 = vmatprep.subr.bf16.mxu0 0
  %1885 = vmatpush1.bf16.msra.mxu0 0
  %1886 = vmatprep.subr.bf16.mxu0 0
  %1887 = vmatpush1.bf16.msra.mxu0 0
  %1888 = vmatprep.subr.bf16.mxu0 0
  %1889 = vmatpush1.bf16.msra.mxu0 0
  %1890 = vmatprep.subr.bf16.mxu0 %v1815
  %1891 = vmatpush1.bf16.msra.mxu0 %v1814
  %1892 = vmatprep.subr.bf16.mxu0 %v1810
  %1893 = vmatpush1.bf16.msra.mxu0 %v1809
  %1894 = vmatprep.subr.bf16.mxu0 %v1805
  %1895 = vmatpush1.bf16.msra.mxu0 %v1804
  %1896 = vmatprep.subr.bf16.mxu0 %v1800
  %1897 = vmatpush1.bf16.msra.mxu0 %v1799
  %1898 = vmatprep.subr.bf16.mxu0 0
  %1899 = vmatpush2.bf16.msra.mxu0 0
  %1900 = vmatprep.subr.bf16.mxu0 0
  %1901 = vmatpush2.bf16.msra.mxu0 0
  %1902 = vmatprep.subr.bf16.mxu0 0
  %1903 = vmatpush2.bf16.msra.mxu0 0
  %1904 = vmatprep.subr.bf16.mxu0 0
  %1905 = vmatpush2.bf16.msra.mxu0 0
  %1906 = vmatprep.subr.bf16.mxu0 0
  %1907 = vmatpush2.bf16.msra.mxu0 0
  %1908 = vmatprep.subr.bf16.mxu0 0
  %1909 = vmatpush2.bf16.msra.mxu0 0
  %1910 = vmatprep.subr.bf16.mxu0 0
  %1911 = vmatpush2.bf16.msra.mxu0 0
  %1912 = vmatprep.subr.bf16.mxu0 0
  %1913 = vmatpush2.bf16.msra.mxu0 0
  %1914 = vmatprep.mubr.bf16.mxu0 0
  %1915 = vmatmul.mubr.bf16.gmra.mxu0 %v1839
  %v1916 = vpop.f32.mrf.mxu0
  %v1917 = vadd.f32 %v1719, %v1916
  %v1918 = vpop.f32.mrf.mxu0
  %v1919 = vadd.f32 %v1723, %v1918
  %v1920 = vpop.f32.mrf.mxu0
  %v1921 = vpop.f32.mrf.mxu0
  %1922 = vdwg.mxu0
  %1923 = vmatprep.subr.bf16.mxu0 0
  %1924 = vmatpush1.bf16.msra.mxu0 0
  %1925 = vmatprep.subr.bf16.mxu0 0
  %1926 = vmatpush1.bf16.msra.mxu0 0
  %1927 = vmatprep.subr.bf16.mxu0 0
  %1928 = vmatpush1.bf16.msra.mxu0 0
  %1929 = vmatprep.subr.bf16.mxu0 0
  %1930 = vmatpush1.bf16.msra.mxu0 0
  %1931 = vmatprep.subr.bf16.mxu0 0
  %1932 = vmatpush1.bf16.msra.mxu0 %v1816
  %1933 = vmatprep.subr.bf16.mxu0 0
  %1934 = vmatpush1.bf16.msra.mxu0 %v1811
  %1935 = vmatprep.subr.bf16.mxu0 0
  %1936 = vmatpush1.bf16.msra.mxu0 %v1806
  %1937 = vmatprep.subr.bf16.mxu0 0
  %1938 = vmatpush1.bf16.msra.mxu0 %v1801
  %1939 = vmatprep.subr.bf16.mxu0 0
  %1940 = vmatpush2.bf16.msra.mxu0 0
  %1941 = vmatprep.subr.bf16.mxu0 0
  %1942 = vmatpush2.bf16.msra.mxu0 0
  %1943 = vmatprep.subr.bf16.mxu0 0
  %1944 = vmatpush2.bf16.msra.mxu0 0
  %1945 = vmatprep.subr.bf16.mxu0 0
  %1946 = vmatpush2.bf16.msra.mxu0 0
  %1947 = vmatprep.subr.bf16.mxu0 0
  %1948 = vmatpush2.bf16.msra.mxu0 0
  %1949 = vmatprep.subr.bf16.mxu0 0
  %1950 = vmatpush2.bf16.msra.mxu0 0
  %1951 = vmatprep.subr.bf16.mxu0 0
  %1952 = vmatpush2.bf16.msra.mxu0 0
  %1953 = vmatprep.subr.bf16.mxu0 0
  %1954 = vmatpush2.bf16.msra.mxu0 0
  %1955 = vmatprep.mubr.bf16.mxu0 0
  %1956 = vmatmul.mubr.bf16.gmra.mxu0 %v1839
  %v1957 = vpop.f32.mrf.mxu0
  %v1958 = vadd.f32 %v1727, %v1957
  %v1959 = vpop.f32.mrf.mxu0
  %v1960 = vpop.f32.mrf.mxu0
  %v1961 = vpop.f32.mrf.mxu0
  %1962 = vdwg.mxu0
  %v1963 = vmul.f32 %v1876, 0.5
  %v1964 = vmul.f32 %v1878, 0.5
  %v1965 = vmul.f32 %v1917, 0.5
  %v1966 = vmul.f32 %v1919, 0.5
  %v1967 = vmul.f32 %v1958, 0.5
  %v1968 = vtanh.pop %v1963
  %v1969 = vtanh.pop %v1964
  %v1970 = vtanh.pop %v1965
  %v1971 = vtanh.pop %v1966
  %v1972 = vtanh.pop %v1967
  %v1973 = vmul.f32 %v1968, 0.5
  %v1974 = vmul.f32 %v1969, 0.5
  %v1975 = vmul.f32 %v1970, 0.5
  %v1976 = vmul.f32 %v1971, 0.5
  %v1977 = vmul.f32 %v1972, 0.5
  %v1978 = vadd.f32 %v1973, 0.5
  %v1979 = vadd.f32 %v1974, 0.5
  %v1980 = vadd.f32 %v1975, 0.5
  %v1981 = vadd.f32 %v1976, 0.5
  %v1982 = vadd.f32 %v1977, 0.5
  %1983 = vst [vmem:[%s10] sm:$0xff] %v1978
  %1984 = vst [vmem:[%s10 + $0x8] sm:$0xff] %v1979
  %1985 = vst [vmem:[%s10 + $0x10] sm:$0xff] %v1980
  %1986 = vst [vmem:[%s10 + $0x18] sm:$0xff] %v1981
  %1987 = vst [vmem:[%s10 + $0x20] sm:$0xff] %v1982
  // Predicated region
  $region42: #{lstm_momentum_forward.1} parent=0 // pred_check
    _
  $region43: #{lstm_momentum_forward.1} parent=0 // pred_check_branch
    %1989 = sbr.rel (0) target = $region45
  $region44: #{lstm_momentum_forward.1} parent=0 // pred_region
    _
  $region45: #{lstm_momentum_forward.1} parent=0 // pred_fallthru
    _
  // Predicated region
  $region46: #{lstm_momentum_forward.1} parent=0 // pred_check
    _
  $region47: #{lstm_momentum_forward.1} parent=0 // pred_check_branch
    %1991 = sbr.rel (0) target = $region49
  $region48: #{lstm_momentum_forward.1} parent=0 // pred_region
    _
  $region49: #{lstm_momentum_forward.1} parent=0 // pred_fallthru
    _

</llo_original>
